<compile_context>
chip_gen: v5e
topology: v5e:2x2
jax: 0.10.0
libtpu: 0.0.40
codegen_flags: <defaults>
</compile_context>

<pallas_src>
import functools
import math

import numpy as np
import jax
import jax.numpy as jnp
from jax.experimental import pallas as pl
from jax.experimental.pallas import tpu as pltpu


# ----------------------------------------------------------------------------
# Fused kernel: conv(3x3,s2,p1)+BN+ReLU -> conv(3x3,s1,p1)+BN+ReLU
#               -> global avg pool -> [Linear -> GELU -> Linear -> Tanh] x2
#               -> alpha * t + 1
# ----------------------------------------------------------------------------
def _hwsr_kernel(x_ref, w1_ref, b1_ref, w2_ref, b2_ref,
                 w1h_ref, b1h_ref, w2h_ref, b2h_ref,
                 out_ref, ypad_ref, *, Bb, Ho, Wo, Cin, C, alpha,
                 fold1, fold2):
    M = Bb * Ho * Wo

    # ---- conv1: 3x3 / stride 2 / pad 1 (BN scale folded into weights) -------
    # x_ref: (Bb, 4, Ho+1, Wo+1, Cin) parity planes of the zero-padded input
    # (bf16); plane p = 2*(row parity) + (col parity).  Tap (kh, kw) is a
    # unit-stride slice of plane ((kh%2)*2 + kw%2).
    if fold1:
        # Channel axis is 128-aligned: fold the 9 taps into the contraction
        # dim and run ONE matmul with K = 9*Cin (concat is a vreg-aligned noop).
        taps = [x_ref[:, (kh % 2) * 2 + (kw % 2),
                      pl.ds(kh // 2, Ho), pl.ds(kw // 2, Wo), :]
                for kh in range(3) for kw in range(3)]
        im1 = jnp.concatenate(taps, axis=-1).reshape(M, 9 * Cin)
        y1 = jnp.dot(im1, w1_ref[...].reshape(9 * Cin, Cin and C),
                     preferred_element_type=jnp.float32)
    else:
        # Small channel count: 9 lane-contiguous accumulating matmuls (no
        # lane-concatenate / relayout, no (M, 9*Cin) temporary).
        y1 = None
        for kh in range(3):
            for kw in range(3):
                p = (kh % 2) * 2 + (kw % 2)
                tap = x_ref[:, p, pl.ds(kh // 2, Ho), pl.ds(kw // 2, Wo), :]
                contrib = jnp.dot(tap.reshape(M, Cin), w1_ref[kh * 3 + kw],
                                  preferred_element_type=jnp.float32)
                y1 = contrib if y1 is None else y1 + contrib
    y1 = jnp.maximum(y1 + b1_ref[...], 0.0)                        # (M, C) f32

    # ---- conv2: 3x3 / stride 1 / pad 1 (BN scale folded into weights) -------
    # Re-zero only the 1-px halo ring of the persistent bf16 scratch (the
    # interior is fully overwritten every grid step).
    zrow = jnp.zeros((Bb, 1, Wo + 2, C), jnp.bfloat16)
    zcol = jnp.zeros((Bb, Ho, 1, C), jnp.bfloat16)
    ypad_ref[:, pl.ds(0, 1), :, :] = zrow
    ypad_ref[:, pl.ds(Ho + 1, 1), :, :] = zrow
    ypad_ref[:, pl.ds(1, Ho), pl.ds(0, 1), :] = zcol
    ypad_ref[:, pl.ds(1, Ho), pl.ds(Wo + 1, 1), :] = zcol
    ypad_ref[:, pl.ds(1, Ho), pl.ds(1, Wo), :] = (
        y1.reshape(Bb, Ho, Wo, C).astype(jnp.bfloat16))

    if fold2:
        taps2 = [ypad_ref[:, pl.ds(kh, Ho), pl.ds(kw, Wo), :]
                 for kh in range(3) for kw in range(3)]
        im2 = jnp.concatenate(taps2, axis=-1).reshape(M, 9 * C)
        y2 = jnp.dot(im2, w2_ref[...].reshape(9 * C, C),
                     preferred_element_type=jnp.float32)
    else:
        y2 = None
        for kh in range(3):
            for kw in range(3):
                tap = ypad_ref[:, pl.ds(kh, Ho), pl.ds(kw, Wo), :]
                contrib = jnp.dot(tap.reshape(M, C), w2_ref[kh * 3 + kw],
                                  preferred_element_type=jnp.float32)
                y2 = contrib if y2 is None else y2 + contrib
    y2 = jnp.maximum(y2 + b2_ref[...], 0.0)                        # (M, C) f32

    # ---- AdaptiveAvgPool2d([1,1]): mean over spatial positions --------------
    pooled = jnp.mean(y2.reshape(Bb, Ho * Wo, C), axis=1)          # (Bb, C)

    # ---- fused scale/ratio heads: Linear -> GELU -> Linear -> Tanh ----------
    # w1h = [w1s | w1r], w2h = blockdiag(w2s, w2r) padded to 128 output lanes.
    # NOTE: tanh-approximate GELU (reference uses exact erf GELU; max abs
    # difference ~3e-4, well inside tolerance).
    h = jnp.dot(pooled, w1h_ref[...],
                preferred_element_type=jnp.float32) + b1h_ref[...]
    c0 = math.sqrt(2.0 / math.pi)
    h = 0.5 * h * (1.0 + jnp.tanh(c0 * (h + 0.044715 * h * h * h)))
    t = jnp.tanh(jnp.dot(h, w2h_ref[...],
                         preferred_element_type=jnp.float32) + b2h_ref[...])
    out_ref[...] = (alpha * t + 1.0).reshape(1, Bb, 128)           # lane-dense


# ----------------------------------------------------------------------------
# VMEM-aware tiling
# ----------------------------------------------------------------------------
def _footprint_bytes(bb, Ho, Wo, Cin, C):
    """Rough per-core VMEM footprint for a batch block of size bb."""
    M = bb * Ho * Wo
    bf16, f32 = 2, 4
    x_blk = bb * 4 * (Ho + 1) * (Wo + 1) * Cin * bf16
    out_blk = bb * 128 * f32
    weights = (9 * Cin * C + 9 * C * C) * bf16 \
        + (2 * C + C * 2 * C + 2 * C + 2 * C * 128 + 128) * f32
    scratch = bb * (Ho + 2) * (Wo + 2) * C * bf16
    acts = 4 * M * C * f32 + 2 * M * max(Cin, C) * bf16   # y1/y2 + tap temps
    return 2 * (x_blk + out_blk) + weights + scratch + acts


def _vmem_budget_bytes():
    try:
        cap = getattr(pltpu.get_tpu_info(), "vmem_capacity_bytes", None)
        if cap:
            return int(cap * 0.7)
    except Exception:
        pass
    return 48 * 2 ** 20          # conservative (fits v7x's 64 MiB per-TC VMEM)


def _pick_batch_block(B, Ho, Wo, Cin, C, budget_bytes, row_target=512):
    divisors = [d for d in range(1, B + 1) if B % d == 0]
    # Prefer >= 2 grid steps so both v7x TensorCores get work on the
    # "parallel" batch axis (single-TC chips only pay ~0.35us extra).
    cands = [d for d in divisors if d <= B // 2] or divisors
    fit = [d for d in cands
           if _footprint_bytes(d, Ho, Wo, Cin, C) <= budget_bytes] or [min(cands)]
    big_enough = [d for d in fit if d * Ho * Wo >= row_target]
    return min(big_enough) if big_enough else max(fit)


# ----------------------------------------------------------------------------
# Wrapper
# ----------------------------------------------------------------------------
def hw_scale_ratio_forward(feat1, feat2, params, alpha, groups):
    x = jnp.concatenate([feat1, feat2], axis=-1)          # NHWC channel concat
    B, H, W, Cin = x.shape
    # TODO(synk): odd H/W (Ho = (H+1)//2 for k=3,s=2,p=1) is not supported by
    # the parity-split tap extraction; even spatial sizes only.
    assert H % 2 == 0 and W % 2 == 0
    Ho, Wo = H // 2, W // 2
    C = params["w1"].shape[-1]                            # = groups * expand
    GE = C

    # Layout glue: zero-pad (p=1), split into the 4 (row, col) parity planes,
    # and cast to bf16 (halves the only per-step HBM->VMEM DMA).
    xp = jnp.pad(x, ((0, 0), (1, 1), (1, 1), (0, 0)))
    xpar = jnp.stack([xp[:, ph::2, pw::2, :]
                      for ph in range(2) for pw in range(2)],
                     axis=1).astype(jnp.bfloat16)         # (B, 4, Ho+1, Wo+1, Cin)

    # Fold BN scale into the conv weights (host-side, once); kernel keeps only
    # the per-channel bias add + ReLU.  Weights stored as (9, Cin, C) bf16.
    w1f = (params["w1"].reshape(9 * Cin, C) * params["s1"]) \
        .astype(jnp.bfloat16).reshape(9, Cin, C)
    w2f = (params["w2"].reshape(9 * C, C) * params["s2"]) \
        .astype(jnp.bfloat16).reshape(9, C, C)

    # Fuse the two heads: concatenated first layer, block-diagonal second layer
    # padded to a lane-dense 128-wide output slab (scale -> lanes [0:groups],
    # ratio -> lanes [groups:2*groups]).
    w1h = jnp.concatenate([params["w1s"], params["w1r"]], axis=1)   # (GE, 2GE)
    b1h = jnp.concatenate([params["b1s"], params["b1r"]], axis=1)   # (1, 2GE)
    w2h = jnp.zeros((2 * GE, 128), jnp.float32)
    w2h = w2h.at[:GE, :groups].set(params["w2s"])
    w2h = w2h.at[GE:, groups:2 * groups].set(params["w2r"])
    b2h = jnp.zeros((1, 128), jnp.float32)
    b2h = b2h.at[:, :groups].set(params["b2s"])
    b2h = b2h.at[:, groups:2 * groups].set(params["b2r"])

    budget = _vmem_budget_bytes()
    Bb = _pick_batch_block(B, Ho, Wo, Cin, C, budget)
    n_steps = B // Bb
    vmem_limit = int(max(32 * 2 ** 20,
                         min(budget, 2 * _footprint_bytes(Bb, Ho, Wo, Cin, C))))

    # Lane-density decision: fold 9 taps into one K=9*C matmul only when the
    # channel (lane) axis is 128-aligned; otherwise per-tap accumulation.
    fold1 = (Cin % 128 == 0)
    fold2 = (C % 128 == 0)

    kernel = functools.partial(_hwsr_kernel, Bb=Bb, Ho=Ho, Wo=Wo,
                               Cin=Cin, C=C, alpha=alpha,
                               fold1=fold1, fold2=fold2)

    out = pl.pallas_call(
        kernel,
        out_shape=jax.ShapeDtypeStruct((n_steps, Bb, 128), jnp.float32),
        grid_spec=pltpu.PrefetchScalarGridSpec(
            num_scalar_prefetch=0,
            grid=(n_steps,),
            in_specs=[
                pl.BlockSpec((Bb, 4, Ho + 1, Wo + 1, Cin),
                             lambda b: (b, 0, 0, 0, 0)),
                pl.BlockSpec((9, Cin, C), lambda b: (0, 0, 0)),
                pl.BlockSpec((1, C), lambda b: (0, 0)),
                pl.BlockSpec((9, C, C), lambda b: (0, 0, 0)),
                pl.BlockSpec((1, C), lambda b: (0, 0)),
                pl.BlockSpec((GE, 2 * GE), lambda b: (0, 0)),
                pl.BlockSpec((1, 2 * GE), lambda b: (0, 0)),
                pl.BlockSpec((2 * GE, 128), lambda b: (0, 0)),
                pl.BlockSpec((1, 128), lambda b: (0, 0)),
            ],
            out_specs=pl.BlockSpec((1, Bb, 128), lambda b: (b, 0, 0)),
            scratch_shapes=[pltpu.VMEM((Bb, Ho + 2, Wo + 2, C), jnp.bfloat16)],
        ),
        compiler_params=pltpu.CompilerParams(
            dimension_semantics=("parallel",),   # independent batch blocks;
                                                 # shards across v7x's 2 TCs
            vmem_limit_bytes=vmem_limit),
    )(xpar, w1f, params["b1"], w2f, params["b2"], w1h, b1h, w2h, b2h)

    out = out.reshape(B, 128)
    scale = out[:, :groups]
    ratio = out[:, groups:2 * groups]
    return scale, ratio


# ----------------------------------------------------------------------------
# Deterministic parameter init (synthetic; shapes follow HWScaleRatio.__init__)
# ----------------------------------------------------------------------------
def init_params(key, in_dim, groups, expand):
    GE = groups * expand
    Cin = in_dim * 2
    ks = jax.random.split(key, 12)

    def nrm(k, shape, scale=0.1):
        return scale * jax.random.normal(k, shape, jnp.float32)

    def bn_fold(k, Ch):
        k1, k2, k3, k4 = jax.random.split(k, 4)
        gamma = 1.0 + 0.1 * jax.random.normal(k1, (Ch,), jnp.float32)
        beta = 0.1 * jax.random.normal(k2, (Ch,), jnp.float32)
        mean = 0.1 * jax.random.normal(k3, (Ch,), jnp.float32)
        var = jax.random.uniform(k4, (Ch,), jnp.float32, minval=0.5, maxval=1.5)
        s = gamma / jnp.sqrt(var + 1e-5)
        b = beta - mean * s
        return s.reshape(1, Ch), b.reshape(1, Ch)

    s1, b1 = bn_fold(ks[2], GE)
    s2, b2 = bn_fold(ks[3], GE)
    return dict(
        w1=nrm(ks[0], (3, 3, Cin, GE)), s1=s1, b1=b1,
        w2=nrm(ks[1], (3, 3, GE, GE)), s2=s2, b2=b2,
        w1s=nrm(ks[4], (GE, GE)), b1s=nrm(ks[5], (1, GE)),
        w2s=nrm(ks[6], (GE, groups)), b2s=nrm(ks[7], (1, groups)),
        w1r=nrm(ks[8], (GE, GE)), b1r=nrm(ks[9], (1, GE)),
        w2r=nrm(ks[10], (GE, groups)), b2r=nrm(ks[11], (1, groups)),
    )


# ----------------------------------------------------------------------------
# Pure-JAX reference (mirrors the PyTorch forward, NHWC, f32, exact GELU)
# ----------------------------------------------------------------------------
def reference(feat1, feat2, params, alpha):
    x = jnp.concatenate([feat1, feat2], axis=-1)

    def cbr(x, w, s, b, stride):
        y = jax.lax.conv_general_dilated(
            x, w, (stride, stride), ((1, 1), (1, 1)),
            dimension_numbers=("NHWC", "HWIO", "NHWC"),
            precision=jax.lax.Precision.HIGHEST)
        return jax.nn.relu(y * s.reshape(1, 1, 1, -1) + b.reshape(1, 1, 1, -1))

    y = cbr(x, params["w1"], params["s1"], params["b1"], 2)
    y = cbr(y, params["w2"], params["s2"], params["b2"], 1)
    pooled = jnp.mean(y, axis=(1, 2))

    def head(w1, b1, w2, b2):
        h = jax.nn.gelu(pooled @ w1 + b1, approximate=False)
        return alpha * jnp.tanh(h @ w2 + b2) + 1.0

    return (head(params["w1s"], params["b1s"], params["w2s"], params["b2s"]),
            head(params["w1r"], params["b1r"], params["w2r"], params["b2r"]))


if __name__ == "__main__":
    B, in_dim, H, W = 2, 4, 16, 16
    groups, expand, alpha = 4, 4, 0.9

    key = jax.random.PRNGKey(0)
    k1, k2, kp = jax.random.split(key, 3)
    # NHWC inputs (PyTorch-equivalent NCHW shape: (2, 4, 16, 16))
    feat1 = jax.random.normal(k1, (B, H, W, in_dim), jnp.float32)
    feat2 = jax.random.normal(k2, (B, H, W, in_dim), jnp.float32)
    params = init_params(kp, in_dim, groups, expand)

    @jax.jit
    def hw_scale_ratio(f1, f2):
        return hw_scale_ratio_forward(f1, f2, params, alpha, groups)

    scale, ratio = hw_scale_ratio(feat1, feat2)
    jax.block_until_ready((scale, ratio))

    ref_scale, ref_ratio = reference(feat1, feat2, params, alpha)
    np.testing.assert_allclose(np.asarray(scale), np.asarray(ref_scale),
                               rtol=2e-2, atol=2e-2)
    np.testing.assert_allclose(np.asarray(ratio), np.asarray(ref_ratio),
                               rtol=2e-2, atol=2e-2)
    print("KERNEL_OK")
</pallas_src>

<mosaic_0001>
module attributes {stable_mosaic.version = 11 : i64} {
  func.func @_hwsr_kernel(%arg0: i32, %arg1: memref<1x4x9x9x8xbf16, #tpu.memory_space<vmem>>, %arg2: memref<9x8x16xbf16, #tpu.memory_space<vmem>>, %arg3: memref<1x16xf32, #tpu.memory_space<vmem>>, %arg4: memref<9x16x16xbf16, #tpu.memory_space<vmem>>, %arg5: memref<1x16xf32, #tpu.memory_space<vmem>>, %arg6: memref<16x32xf32, #tpu.memory_space<vmem>>, %arg7: memref<1x32xf32, #tpu.memory_space<vmem>>, %arg8: memref<32x128xf32, #tpu.memory_space<vmem>>, %arg9: memref<1x128xf32, #tpu.memory_space<vmem>>, %arg10: memref<1x1x128xf32, #tpu.memory_space<vmem>>, %arg11: memref<1x10x10x16xbf16, #tpu.memory_space<vmem>>) attributes {dimension_semantics = [#tpu.dimension_semantics<parallel>], iteration_bounds = array<i64: 2>, scalar_prefetch = 0 : i64, scratch_operands = 1 : i64, tpu.core_type = #tpu.core_type<tc>, window_params = [{transform_indices = @transform_0, window_bounds = array<i64: 1, 4, 9, 9, 8>}, {pipeline_mode = #tpu.pipeline_mode<synchronous>, transform_indices = @transform_1, window_bounds = array<i64: 9, 8, 16>}, {pipeline_mode = #tpu.pipeline_mode<synchronous>, transform_indices = @transform_2, window_bounds = array<i64: 1, 16>}, {pipeline_mode = #tpu.pipeline_mode<synchronous>, transform_indices = @transform_3, window_bounds = array<i64: 9, 16, 16>}, {pipeline_mode = #tpu.pipeline_mode<synchronous>, transform_indices = @transform_4, window_bounds = array<i64: 1, 16>}, {pipeline_mode = #tpu.pipeline_mode<synchronous>, transform_indices = @transform_5, window_bounds = array<i64: 16, 32>}, {pipeline_mode = #tpu.pipeline_mode<synchronous>, transform_indices = @transform_6, window_bounds = array<i64: 1, 32>}, {pipeline_mode = #tpu.pipeline_mode<synchronous>, transform_indices = @transform_7, window_bounds = array<i64: 32, 128>}, {pipeline_mode = #tpu.pipeline_mode<synchronous>, transform_indices = @transform_8, window_bounds = array<i64: 1, 128>}, {transform_indices = @transform_9, window_bounds = array<i64: 1, 1, 128>}]} {
    %c0 = arith.constant 0 : index
    %c0_0 = arith.constant 0 : index
    %c0_1 = arith.constant 0 : index
    %c0_2 = arith.constant 0 : index
    %c0_3 = arith.constant 0 : index
    %0 = vector.load %arg1[%c0, %c0_0, %c0_1, %c0_2, %c0_3] : memref<1x4x9x9x8xbf16, #tpu.memory_space<vmem>>, vector<1x1x8x8x8xbf16>
    %1 = vector.shape_cast %0 : vector<1x1x8x8x8xbf16> to vector<1x8x8x8xbf16>
    %2 = vector.shape_cast %1 : vector<1x8x8x8xbf16> to vector<64x8xbf16>
    %c0_4 = arith.constant 0 : index
    %c0_5 = arith.constant 0 : index
    %c0_6 = arith.constant 0 : index
    %3 = vector.load %arg2[%c0_4, %c0_5, %c0_6] : memref<9x8x16xbf16, #tpu.memory_space<vmem>>, vector<1x8x16xbf16>
    %4 = vector.shape_cast %3 : vector<1x8x16xbf16> to vector<8x16xbf16>
    %cst = arith.constant dense<0.000000e+00> : vector<64x16xf32>
    %5 = tpu.matmul %2, %4, %cst {dimension_numbers = #tpu.dot_dimension_numbers<[1], [0], [0], [1], [0, 0, 1, 1], [], []>} : vector<64x8xbf16>, vector<8x16xbf16>, vector<64x16xf32> -> vector<64x16xf32>
    %c0_7 = arith.constant 0 : index
    %c1 = arith.constant 1 : index
    %c0_8 = arith.constant 0 : index
    %c0_9 = arith.constant 0 : index
    %c0_10 = arith.constant 0 : index
    %6 = vector.load %arg1[%c0_7, %c1, %c0_8, %c0_9, %c0_10] : memref<1x4x9x9x8xbf16, #tpu.memory_space<vmem>>, vector<1x1x8x8x8xbf16>
    %7 = vector.shape_cast %6 : vector<1x1x8x8x8xbf16> to vector<1x8x8x8xbf16>
    %8 = vector.shape_cast %7 : vector<1x8x8x8xbf16> to vector<64x8xbf16>
    %c1_11 = arith.constant 1 : index
    %c0_12 = arith.constant 0 : index
    %c0_13 = arith.constant 0 : index
    %9 = vector.load %arg2[%c1_11, %c0_12, %c0_13] : memref<9x8x16xbf16, #tpu.memory_space<vmem>>, vector<1x8x16xbf16>
    %10 = vector.shape_cast %9 : vector<1x8x16xbf16> to vector<8x16xbf16>
    %cst_14 = arith.constant dense<0.000000e+00> : vector<64x16xf32>
    %11 = tpu.matmul %8, %10, %cst_14 {dimension_numbers = #tpu.dot_dimension_numbers<[1], [0], [0], [1], [0, 0, 1, 1], [], []>} : vector<64x8xbf16>, vector<8x16xbf16>, vector<64x16xf32> -> vector<64x16xf32>
    %12 = arith.addf %5, %11 : vector<64x16xf32>
    %c0_15 = arith.constant 0 : index
    %c0_16 = arith.constant 0 : index
    %c0_17 = arith.constant 0 : index
    %c1_18 = arith.constant 1 : index
    %c0_19 = arith.constant 0 : index
    %13 = vector.load %arg1[%c0_15, %c0_16, %c0_17, %c1_18, %c0_19] : memref<1x4x9x9x8xbf16, #tpu.memory_space<vmem>>, vector<1x1x8x8x8xbf16>
    %14 = vector.shape_cast %13 : vector<1x1x8x8x8xbf16> to vector<1x8x8x8xbf16>
    %15 = vector.shape_cast %14 : vector<1x8x8x8xbf16> to vector<64x8xbf16>
    %c2 = arith.constant 2 : index
    %c0_20 = arith.constant 0 : index
    %c0_21 = arith.constant 0 : index
    %16 = vector.load %arg2[%c2, %c0_20, %c0_21] : memref<9x8x16xbf16, #tpu.memory_space<vmem>>, vector<1x8x16xbf16>
    %17 = vector.shape_cast %16 : vector<1x8x16xbf16> to vector<8x16xbf16>
    %cst_22 = arith.constant dense<0.000000e+00> : vector<64x16xf32>
    %18 = tpu.matmul %15, %17, %cst_22 {dimension_numbers = #tpu.dot_dimension_numbers<[1], [0], [0], [1], [0, 0, 1, 1], [], []>} : vector<64x8xbf16>, vector<8x16xbf16>, vector<64x16xf32> -> vector<64x16xf32>
    %19 = arith.addf %12, %18 : vector<64x16xf32>
    %c0_23 = arith.constant 0 : index
    %c2_24 = arith.constant 2 : index
    %c0_25 = arith.constant 0 : index
    %c0_26 = arith.constant 0 : index
    %c0_27 = arith.constant 0 : index
    %20 = vector.load %arg1[%c0_23, %c2_24, %c0_25, %c0_26, %c0_27] : memref<1x4x9x9x8xbf16, #tpu.memory_space<vmem>>, vector<1x1x8x8x8xbf16>
    %21 = vector.shape_cast %20 : vector<1x1x8x8x8xbf16> to vector<1x8x8x8xbf16>
    %22 = vector.shape_cast %21 : vector<1x8x8x8xbf16> to vector<64x8xbf16>
    %c3 = arith.constant 3 : index
    %c0_28 = arith.constant 0 : index
    %c0_29 = arith.constant 0 : index
    %23 = vector.load %arg2[%c3, %c0_28, %c0_29] : memref<9x8x16xbf16, #tpu.memory_space<vmem>>, vector<1x8x16xbf16>
    %24 = vector.shape_cast %23 : vector<1x8x16xbf16> to vector<8x16xbf16>
    %cst_30 = arith.constant dense<0.000000e+00> : vector<64x16xf32>
    %25 = tpu.matmul %22, %24, %cst_30 {dimension_numbers = #tpu.dot_dimension_numbers<[1], [0], [0], [1], [0, 0, 1, 1], [], []>} : vector<64x8xbf16>, vector<8x16xbf16>, vector<64x16xf32> -> vector<64x16xf32>
    %26 = arith.addf %19, %25 : vector<64x16xf32>
    %c0_31 = arith.constant 0 : index
    %c3_32 = arith.constant 3 : index
    %c0_33 = arith.constant 0 : index
    %c0_34 = arith.constant 0 : index
    %c0_35 = arith.constant 0 : index
    %27 = vector.load %arg1[%c0_31, %c3_32, %c0_33, %c0_34, %c0_35] : memref<1x4x9x9x8xbf16, #tpu.memory_space<vmem>>, vector<1x1x8x8x8xbf16>
    %28 = vector.shape_cast %27 : vector<1x1x8x8x8xbf16> to vector<1x8x8x8xbf16>
    %29 = vector.shape_cast %28 : vector<1x8x8x8xbf16> to vector<64x8xbf16>
    %c4 = arith.constant 4 : index
    %c0_36 = arith.constant 0 : index
    %c0_37 = arith.constant 0 : index
    %30 = vector.load %arg2[%c4, %c0_36, %c0_37] : memref<9x8x16xbf16, #tpu.memory_space<vmem>>, vector<1x8x16xbf16>
    %31 = vector.shape_cast %30 : vector<1x8x16xbf16> to vector<8x16xbf16>
    %cst_38 = arith.constant dense<0.000000e+00> : vector<64x16xf32>
    %32 = tpu.matmul %29, %31, %cst_38 {dimension_numbers = #tpu.dot_dimension_numbers<[1], [0], [0], [1], [0, 0, 1, 1], [], []>} : vector<64x8xbf16>, vector<8x16xbf16>, vector<64x16xf32> -> vector<64x16xf32>
    %33 = arith.addf %26, %32 : vector<64x16xf32>
    %c0_39 = arith.constant 0 : index
    %c2_40 = arith.constant 2 : index
    %c0_41 = arith.constant 0 : index
    %c1_42 = arith.constant 1 : index
    %c0_43 = arith.constant 0 : index
    %34 = vector.load %arg1[%c0_39, %c2_40, %c0_41, %c1_42, %c0_43] : memref<1x4x9x9x8xbf16, #tpu.memory_space<vmem>>, vector<1x1x8x8x8xbf16>
    %35 = vector.shape_cast %34 : vector<1x1x8x8x8xbf16> to vector<1x8x8x8xbf16>
    %36 = vector.shape_cast %35 : vector<1x8x8x8xbf16> to vector<64x8xbf16>
    %c5 = arith.constant 5 : index
    %c0_44 = arith.constant 0 : index
    %c0_45 = arith.constant 0 : index
    %37 = vector.load %arg2[%c5, %c0_44, %c0_45] : memref<9x8x16xbf16, #tpu.memory_space<vmem>>, vector<1x8x16xbf16>
    %38 = vector.shape_cast %37 : vector<1x8x16xbf16> to vector<8x16xbf16>
    %cst_46 = arith.constant dense<0.000000e+00> : vector<64x16xf32>
    %39 = tpu.matmul %36, %38, %cst_46 {dimension_numbers = #tpu.dot_dimension_numbers<[1], [0], [0], [1], [0, 0, 1, 1], [], []>} : vector<64x8xbf16>, vector<8x16xbf16>, vector<64x16xf32> -> vector<64x16xf32>
    %40 = arith.addf %33, %39 : vector<64x16xf32>
    %c0_47 = arith.constant 0 : index
    %c0_48 = arith.constant 0 : index
    %c1_49 = arith.constant 1 : index
    %c0_50 = arith.constant 0 : index
    %c0_51 = arith.constant 0 : index
    %41 = vector.load %arg1[%c0_47, %c0_48, %c1_49, %c0_50, %c0_51] : memref<1x4x9x9x8xbf16, #tpu.memory_space<vmem>>, vector<1x1x8x8x8xbf16>
    %42 = vector.shape_cast %41 : vector<1x1x8x8x8xbf16> to vector<1x8x8x8xbf16>
    %43 = vector.shape_cast %42 : vector<1x8x8x8xbf16> to vector<64x8xbf16>
    %c6 = arith.constant 6 : index
    %c0_52 = arith.constant 0 : index
    %c0_53 = arith.constant 0 : index
    %44 = vector.load %arg2[%c6, %c0_52, %c0_53] : memref<9x8x16xbf16, #tpu.memory_space<vmem>>, vector<1x8x16xbf16>
    %45 = vector.shape_cast %44 : vector<1x8x16xbf16> to vector<8x16xbf16>
    %cst_54 = arith.constant dense<0.000000e+00> : vector<64x16xf32>
    %46 = tpu.matmul %43, %45, %cst_54 {dimension_numbers = #tpu.dot_dimension_numbers<[1], [0], [0], [1], [0, 0, 1, 1], [], []>} : vector<64x8xbf16>, vector<8x16xbf16>, vector<64x16xf32> -> vector<64x16xf32>
    %47 = arith.addf %40, %46 : vector<64x16xf32>
    %c0_55 = arith.constant 0 : index
    %c1_56 = arith.constant 1 : index
    %c1_57 = arith.constant 1 : index
    %c0_58 = arith.constant 0 : index
    %c0_59 = arith.constant 0 : index
    %48 = vector.load %arg1[%c0_55, %c1_56, %c1_57, %c0_58, %c0_59] : memref<1x4x9x9x8xbf16, #tpu.memory_space<vmem>>, vector<1x1x8x8x8xbf16>
    %49 = vector.shape_cast %48 : vector<1x1x8x8x8xbf16> to vector<1x8x8x8xbf16>
    %50 = vector.shape_cast %49 : vector<1x8x8x8xbf16> to vector<64x8xbf16>
    %c7 = arith.constant 7 : index
    %c0_60 = arith.constant 0 : index
    %c0_61 = arith.constant 0 : index
    %51 = vector.load %arg2[%c7, %c0_60, %c0_61] : memref<9x8x16xbf16, #tpu.memory_space<vmem>>, vector<1x8x16xbf16>
    %52 = vector.shape_cast %51 : vector<1x8x16xbf16> to vector<8x16xbf16>
    %cst_62 = arith.constant dense<0.000000e+00> : vector<64x16xf32>
    %53 = tpu.matmul %50, %52, %cst_62 {dimension_numbers = #tpu.dot_dimension_numbers<[1], [0], [0], [1], [0, 0, 1, 1], [], []>} : vector<64x8xbf16>, vector<8x16xbf16>, vector<64x16xf32> -> vector<64x16xf32>
    %54 = arith.addf %47, %53 : vector<64x16xf32>
    %c0_63 = arith.constant 0 : index
    %c0_64 = arith.constant 0 : index
    %c1_65 = arith.constant 1 : index
    %c1_66 = arith.constant 1 : index
    %c0_67 = arith.constant 0 : index
    %55 = vector.load %arg1[%c0_63, %c0_64, %c1_65, %c1_66, %c0_67] : memref<1x4x9x9x8xbf16, #tpu.memory_space<vmem>>, vector<1x1x8x8x8xbf16>
    %56 = vector.shape_cast %55 : vector<1x1x8x8x8xbf16> to vector<1x8x8x8xbf16>
    %57 = vector.shape_cast %56 : vector<1x8x8x8xbf16> to vector<64x8xbf16>
    %c8 = arith.constant 8 : index
    %c0_68 = arith.constant 0 : index
    %c0_69 = arith.constant 0 : index
    %58 = vector.load %arg2[%c8, %c0_68, %c0_69] : memref<9x8x16xbf16, #tpu.memory_space<vmem>>, vector<1x8x16xbf16>
    %59 = vector.shape_cast %58 : vector<1x8x16xbf16> to vector<8x16xbf16>
    %cst_70 = arith.constant dense<0.000000e+00> : vector<64x16xf32>
    %60 = tpu.matmul %57, %59, %cst_70 {dimension_numbers = #tpu.dot_dimension_numbers<[1], [0], [0], [1], [0, 0, 1, 1], [], []>} : vector<64x8xbf16>, vector<8x16xbf16>, vector<64x16xf32> -> vector<64x16xf32>
    %61 = arith.addf %54, %60 : vector<64x16xf32>
    %c0_71 = arith.constant 0 : index
    %c0_72 = arith.constant 0 : index
    %62 = vector.load %arg3[%c0_71, %c0_72] : memref<1x16xf32, #tpu.memory_space<vmem>>, vector<1x16xf32>
    %63 = vector.broadcast %62 : vector<1x16xf32> to vector<64x16xf32>
    %64 = arith.addf %61, %63 : vector<64x16xf32>
    %cst_73 = arith.constant 0.000000e+00 : f32
    %65 = vector.broadcast %cst_73 : f32 to vector<64x16xf32>
    %66 = arith.maximumf %64, %65 : vector<64x16xf32>
    %cst_74 = arith.constant 0.000000e+00 : bf16
    %67 = vector.broadcast %cst_74 : bf16 to vector<1x1x10x16xbf16>
    %cst_75 = arith.constant 0.000000e+00 : bf16
    %68 = vector.broadcast %cst_75 : bf16 to vector<1x8x1x16xbf16>
    %c0_76 = arith.constant 0 : index
    %c0_77 = arith.constant 0 : index
    %c0_78 = arith.constant 0 : index
    %c0_79 = arith.constant 0 : index
    %69 = vector.load %arg11[%c0_76, %c0_77, %c0_78, %c0_79] : memref<1x10x10x16xbf16, #tpu.memory_space<vmem>>, vector<1x1x10x16xbf16>
    tpu.vector_store %arg11[%c0_76, %c0_77, %c0_78, %c0_79], %67 {strides = array<i32>} : memref<1x10x10x16xbf16, #tpu.memory_space<vmem>>, vector<1x1x10x16xbf16>,
    %c0_80 = arith.constant 0 : index
    %c9 = arith.constant 9 : index
    %c0_81 = arith.constant 0 : index
    %c0_82 = arith.constant 0 : index
    %70 = vector.load %arg11[%c0_80, %c9, %c0_81, %c0_82] : memref<1x10x10x16xbf16, #tpu.memory_space<vmem>>, vector<1x1x10x16xbf16>
    tpu.vector_store %arg11[%c0_80, %c9, %c0_81, %c0_82], %67 {strides = array<i32>} : memref<1x10x10x16xbf16, #tpu.memory_space<vmem>>, vector<1x1x10x16xbf16>,
    %c0_83 = arith.constant 0 : index
    %c1_84 = arith.constant 1 : index
    %c0_85 = arith.constant 0 : index
    %c0_86 = arith.constant 0 : index
    %71 = vector.load %arg11[%c0_83, %c1_84, %c0_85, %c0_86] : memref<1x10x10x16xbf16, #tpu.memory_space<vmem>>, vector<1x8x1x16xbf16>
    tpu.vector_store %arg11[%c0_83, %c1_84, %c0_85, %c0_86], %68 {strides = array<i32>} : memref<1x10x10x16xbf16, #tpu.memory_space<vmem>>, vector<1x8x1x16xbf16>,
    %c0_87 = arith.constant 0 : index
    %c1_88 = arith.constant 1 : index
    %c9_89 = arith.constant 9 : index
    %c0_90 = arith.constant 0 : index
    %72 = vector.load %arg11[%c0_87, %c1_88, %c9_89, %c0_90] : memref<1x10x10x16xbf16, #tpu.memory_space<vmem>>, vector<1x8x1x16xbf16>
    tpu.vector_store %arg11[%c0_87, %c1_88, %c9_89, %c0_90], %68 {strides = array<i32>} : memref<1x10x10x16xbf16, #tpu.memory_space<vmem>>, vector<1x8x1x16xbf16>,
    %73 = vector.shape_cast %66 : vector<64x16xf32> to vector<1x8x8x16xf32>
    %74 = arith.truncf %73 : vector<1x8x8x16xf32> to vector<1x8x8x16xbf16>
    %c0_91 = arith.constant 0 : index
    %c1_92 = arith.constant 1 : index
    %c1_93 = arith.constant 1 : index
    %c0_94 = arith.constant 0 : index
    %75 = vector.load %arg11[%c0_91, %c1_92, %c1_93, %c0_94] : memref<1x10x10x16xbf16, #tpu.memory_space<vmem>>, vector<1x8x8x16xbf16>
    tpu.vector_store %arg11[%c0_91, %c1_92, %c1_93, %c0_94], %74 {strides = array<i32>} : memref<1x10x10x16xbf16, #tpu.memory_space<vmem>>, vector<1x8x8x16xbf16>,
    %c0_95 = arith.constant 0 : index
    %c0_96 = arith.constant 0 : index
    %c0_97 = arith.constant 0 : index
    %c0_98 = arith.constant 0 : index
    %76 = vector.load %arg11[%c0_95, %c0_96, %c0_97, %c0_98] : memref<1x10x10x16xbf16, #tpu.memory_space<vmem>>, vector<1x8x8x16xbf16>
    %77 = vector.shape_cast %76 : vector<1x8x8x16xbf16> to vector<64x16xbf16>
    %c0_99 = arith.constant 0 : index
    %c0_100 = arith.constant 0 : index
    %c0_101 = arith.constant 0 : index
    %78 = vector.load %arg4[%c0_99, %c0_100, %c0_101] : memref<9x16x16xbf16, #tpu.memory_space<vmem>>, vector<1x16x16xbf16>
    %79 = vector.shape_cast %78 : vector<1x16x16xbf16> to vector<16x16xbf16>
    %cst_102 = arith.constant dense<0.000000e+00> : vector<64x16xf32>
    %80 = tpu.matmul %77, %79, %cst_102 {dimension_numbers = #tpu.dot_dimension_numbers<[1], [0], [0], [1], [0, 0, 1, 1], [], []>} : vector<64x16xbf16>, vector<16x16xbf16>, vector<64x16xf32> -> vector<64x16xf32>
    %c0_103 = arith.constant 0 : index
    %c0_104 = arith.constant 0 : index
    %c1_105 = arith.constant 1 : index
    %c0_106 = arith.constant 0 : index
    %81 = vector.load %arg11[%c0_103, %c0_104, %c1_105, %c0_106] : memref<1x10x10x16xbf16, #tpu.memory_space<vmem>>, vector<1x8x8x16xbf16>
    %82 = vector.shape_cast %81 : vector<1x8x8x16xbf16> to vector<64x16xbf16>
    %c1_107 = arith.constant 1 : index
    %c0_108 = arith.constant 0 : index
    %c0_109 = arith.constant 0 : index
    %83 = vector.load %arg4[%c1_107, %c0_108, %c0_109] : memref<9x16x16xbf16, #tpu.memory_space<vmem>>, vector<1x16x16xbf16>
    %84 = vector.shape_cast %83 : vector<1x16x16xbf16> to vector<16x16xbf16>
    %cst_110 = arith.constant dense<0.000000e+00> : vector<64x16xf32>
    %85 = tpu.matmul %82, %84, %cst_110 {dimension_numbers = #tpu.dot_dimension_numbers<[1], [0], [0], [1], [0, 0, 1, 1], [], []>} : vector<64x16xbf16>, vector<16x16xbf16>, vector<64x16xf32> -> vector<64x16xf32>
    %86 = arith.addf %80, %85 : vector<64x16xf32>
    %c0_111 = arith.constant 0 : index
    %c0_112 = arith.constant 0 : index
    %c2_113 = arith.constant 2 : index
    %c0_114 = arith.constant 0 : index
    %87 = vector.load %arg11[%c0_111, %c0_112, %c2_113, %c0_114] : memref<1x10x10x16xbf16, #tpu.memory_space<vmem>>, vector<1x8x8x16xbf16>
    %88 = vector.shape_cast %87 : vector<1x8x8x16xbf16> to vector<64x16xbf16>
    %c2_115 = arith.constant 2 : index
    %c0_116 = arith.constant 0 : index
    %c0_117 = arith.constant 0 : index
    %89 = vector.load %arg4[%c2_115, %c0_116, %c0_117] : memref<9x16x16xbf16, #tpu.memory_space<vmem>>, vector<1x16x16xbf16>
    %90 = vector.shape_cast %89 : vector<1x16x16xbf16> to vector<16x16xbf16>
    %cst_118 = arith.constant dense<0.000000e+00> : vector<64x16xf32>
    %91 = tpu.matmul %88, %90, %cst_118 {dimension_numbers = #tpu.dot_dimension_numbers<[1], [0], [0], [1], [0, 0, 1, 1], [], []>} : vector<64x16xbf16>, vector<16x16xbf16>, vector<64x16xf32> -> vector<64x16xf32>
    %92 = arith.addf %86, %91 : vector<64x16xf32>
    %c0_119 = arith.constant 0 : index
    %c1_120 = arith.constant 1 : index
    %c0_121 = arith.constant 0 : index
    %c0_122 = arith.constant 0 : index
    %93 = vector.load %arg11[%c0_119, %c1_120, %c0_121, %c0_122] : memref<1x10x10x16xbf16, #tpu.memory_space<vmem>>, vector<1x8x8x16xbf16>
    %94 = vector.shape_cast %93 : vector<1x8x8x16xbf16> to vector<64x16xbf16>
    %c3_123 = arith.constant 3 : index
    %c0_124 = arith.constant 0 : index
    %c0_125 = arith.constant 0 : index
    %95 = vector.load %arg4[%c3_123, %c0_124, %c0_125] : memref<9x16x16xbf16, #tpu.memory_space<vmem>>, vector<1x16x16xbf16>
    %96 = vector.shape_cast %95 : vector<1x16x16xbf16> to vector<16x16xbf16>
    %cst_126 = arith.constant dense<0.000000e+00> : vector<64x16xf32>
    %97 = tpu.matmul %94, %96, %cst_126 {dimension_numbers = #tpu.dot_dimension_numbers<[1], [0], [0], [1], [0, 0, 1, 1], [], []>} : vector<64x16xbf16>, vector<16x16xbf16>, vector<64x16xf32> -> vector<64x16xf32>
    %98 = arith.addf %92, %97 : vector<64x16xf32>
    %c0_127 = arith.constant 0 : index
    %c1_128 = arith.constant 1 : index
    %c1_129 = arith.constant 1 : index
    %c0_130 = arith.constant 0 : index
    %99 = vector.load %arg11[%c0_127, %c1_128, %c1_129, %c0_130] : memref<1x10x10x16xbf16, #tpu.memory_space<vmem>>, vector<1x8x8x16xbf16>
    %100 = vector.shape_cast %99 : vector<1x8x8x16xbf16> to vector<64x16xbf16>
    %c4_131 = arith.constant 4 : index
    %c0_132 = arith.constant 0 : index
    %c0_133 = arith.constant 0 : index
    %101 = vector.load %arg4[%c4_131, %c0_132, %c0_133] : memref<9x16x16xbf16, #tpu.memory_space<vmem>>, vector<1x16x16xbf16>
    %102 = vector.shape_cast %101 : vector<1x16x16xbf16> to vector<16x16xbf16>
    %cst_134 = arith.constant dense<0.000000e+00> : vector<64x16xf32>
    %103 = tpu.matmul %100, %102, %cst_134 {dimension_numbers = #tpu.dot_dimension_numbers<[1], [0], [0], [1], [0, 0, 1, 1], [], []>} : vector<64x16xbf16>, vector<16x16xbf16>, vector<64x16xf32> -> vector<64x16xf32>
    %104 = arith.addf %98, %103 : vector<64x16xf32>
    %c0_135 = arith.constant 0 : index
    %c1_136 = arith.constant 1 : index
    %c2_137 = arith.constant 2 : index
    %c0_138 = arith.constant 0 : index
    %105 = vector.load %arg11[%c0_135, %c1_136, %c2_137, %c0_138] : memref<1x10x10x16xbf16, #tpu.memory_space<vmem>>, vector<1x8x8x16xbf16>
    %106 = vector.shape_cast %105 : vector<1x8x8x16xbf16> to vector<64x16xbf16>
    %c5_139 = arith.constant 5 : index
    %c0_140 = arith.constant 0 : index
    %c0_141 = arith.constant 0 : index
    %107 = vector.load %arg4[%c5_139, %c0_140, %c0_141] : memref<9x16x16xbf16, #tpu.memory_space<vmem>>, vector<1x16x16xbf16>
    %108 = vector.shape_cast %107 : vector<1x16x16xbf16> to vector<16x16xbf16>
    %cst_142 = arith.constant dense<0.000000e+00> : vector<64x16xf32>
    %109 = tpu.matmul %106, %108, %cst_142 {dimension_numbers = #tpu.dot_dimension_numbers<[1], [0], [0], [1], [0, 0, 1, 1], [], []>} : vector<64x16xbf16>, vector<16x16xbf16>, vector<64x16xf32> -> vector<64x16xf32>
    %110 = arith.addf %104, %109 : vector<64x16xf32>
    %c0_143 = arith.constant 0 : index
    %c2_144 = arith.constant 2 : index
    %c0_145 = arith.constant 0 : index
    %c0_146 = arith.constant 0 : index
    %111 = vector.load %arg11[%c0_143, %c2_144, %c0_145, %c0_146] : memref<1x10x10x16xbf16, #tpu.memory_space<vmem>>, vector<1x8x8x16xbf16>
    %112 = vector.shape_cast %111 : vector<1x8x8x16xbf16> to vector<64x16xbf16>
    %c6_147 = arith.constant 6 : index
    %c0_148 = arith.constant 0 : index
    %c0_149 = arith.constant 0 : index
    %113 = vector.load %arg4[%c6_147, %c0_148, %c0_149] : memref<9x16x16xbf16, #tpu.memory_space<vmem>>, vector<1x16x16xbf16>
    %114 = vector.shape_cast %113 : vector<1x16x16xbf16> to vector<16x16xbf16>
    %cst_150 = arith.constant dense<0.000000e+00> : vector<64x16xf32>
    %115 = tpu.matmul %112, %114, %cst_150 {dimension_numbers = #tpu.dot_dimension_numbers<[1], [0], [0], [1], [0, 0, 1, 1], [], []>} : vector<64x16xbf16>, vector<16x16xbf16>, vector<64x16xf32> -> vector<64x16xf32>
    %116 = arith.addf %110, %115 : vector<64x16xf32>
    %c0_151 = arith.constant 0 : index
    %c2_152 = arith.constant 2 : index
    %c1_153 = arith.constant 1 : index
    %c0_154 = arith.constant 0 : index
    %117 = vector.load %arg11[%c0_151, %c2_152, %c1_153, %c0_154] : memref<1x10x10x16xbf16, #tpu.memory_space<vmem>>, vector<1x8x8x16xbf16>
    %118 = vector.shape_cast %117 : vector<1x8x8x16xbf16> to vector<64x16xbf16>
    %c7_155 = arith.constant 7 : index
    %c0_156 = arith.constant 0 : index
    %c0_157 = arith.constant 0 : index
    %119 = vector.load %arg4[%c7_155, %c0_156, %c0_157] : memref<9x16x16xbf16, #tpu.memory_space<vmem>>, vector<1x16x16xbf16>
    %120 = vector.shape_cast %119 : vector<1x16x16xbf16> to vector<16x16xbf16>
    %cst_158 = arith.constant dense<0.000000e+00> : vector<64x16xf32>
    %121 = tpu.matmul %118, %120, %cst_158 {dimension_numbers = #tpu.dot_dimension_numbers<[1], [0], [0], [1], [0, 0, 1, 1], [], []>} : vector<64x16xbf16>, vector<16x16xbf16>, vector<64x16xf32> -> vector<64x16xf32>
    %122 = arith.addf %116, %121 : vector<64x16xf32>
    %c0_159 = arith.constant 0 : index
    %c2_160 = arith.constant 2 : index
    %c2_161 = arith.constant 2 : index
    %c0_162 = arith.constant 0 : index
    %123 = vector.load %arg11[%c0_159, %c2_160, %c2_161, %c0_162] : memref<1x10x10x16xbf16, #tpu.memory_space<vmem>>, vector<1x8x8x16xbf16>
    %124 = vector.shape_cast %123 : vector<1x8x8x16xbf16> to vector<64x16xbf16>
    %c8_163 = arith.constant 8 : index
    %c0_164 = arith.constant 0 : index
    %c0_165 = arith.constant 0 : index
    %125 = vector.load %arg4[%c8_163, %c0_164, %c0_165] : memref<9x16x16xbf16, #tpu.memory_space<vmem>>, vector<1x16x16xbf16>
    %126 = vector.shape_cast %125 : vector<1x16x16xbf16> to vector<16x16xbf16>
    %cst_166 = arith.constant dense<0.000000e+00> : vector<64x16xf32>
    %127 = tpu.matmul %124, %126, %cst_166 {dimension_numbers = #tpu.dot_dimension_numbers<[1], [0], [0], [1], [0, 0, 1, 1], [], []>} : vector<64x16xbf16>, vector<16x16xbf16>, vector<64x16xf32> -> vector<64x16xf32>
    %128 = arith.addf %122, %127 : vector<64x16xf32>
    %c0_167 = arith.constant 0 : index
    %c0_168 = arith.constant 0 : index
    %129 = vector.load %arg5[%c0_167, %c0_168] : memref<1x16xf32, #tpu.memory_space<vmem>>, vector<1x16xf32>
    %130 = vector.broadcast %129 : vector<1x16xf32> to vector<64x16xf32>
    %131 = arith.addf %128, %130 : vector<64x16xf32>
    %cst_169 = arith.constant 0.000000e+00 : f32
    %132 = vector.broadcast %cst_169 : f32 to vector<64x16xf32>
    %133 = arith.maximumf %131, %132 : vector<64x16xf32>
    %134 = vector.shape_cast %133 : vector<64x16xf32> to vector<1x64x16xf32>
    %cst_170 = arith.constant dense<0.000000e+00> : vector<1x16xf32>
    %135 = vector.multi_reduction <add>, %134, %cst_170 [1] : vector<1x64x16xf32> to vector<1x16xf32>
    %cst_171 = arith.constant 6.400000e+01 : f32
    %136 = vector.broadcast %cst_171 : f32 to vector<1x16xf32>
    %137 = arith.divf %135, %136 : vector<1x16xf32>
    %c0_172 = arith.constant 0 : index
    %c0_173 = arith.constant 0 : index
    %138 = vector.load %arg6[%c0_172, %c0_173] : memref<16x32xf32, #tpu.memory_space<vmem>>, vector<16x32xf32>
    %cst_174 = arith.constant dense<0.000000e+00> : vector<1x32xf32>
    %139 = tpu.matmul %137, %138, %cst_174 {dimension_numbers = #tpu.dot_dimension_numbers<[1], [0], [0], [1], [0, 0, 1, 1], [], []>} : vector<1x16xf32>, vector<16x32xf32>, vector<1x32xf32> -> vector<1x32xf32>
    %c0_175 = arith.constant 0 : index
    %c0_176 = arith.constant 0 : index
    %140 = vector.load %arg7[%c0_175, %c0_176] : memref<1x32xf32, #tpu.memory_space<vmem>>, vector<1x32xf32>
    %141 = arith.addf %139, %140 : vector<1x32xf32>
    %cst_177 = arith.constant 5.000000e-01 : f32
    %142 = vector.broadcast %cst_177 : f32 to vector<1x32xf32>
    %143 = arith.mulf %142, %141 : vector<1x32xf32>
    %cst_178 = arith.constant 4.471500e-02 : f32
    %144 = vector.broadcast %cst_178 : f32 to vector<1x32xf32>
    %145 = arith.mulf %144, %141 : vector<1x32xf32>
    %146 = arith.mulf %145, %141 : vector<1x32xf32>
    %147 = arith.mulf %146, %141 : vector<1x32xf32>
    %148 = arith.addf %141, %147 : vector<1x32xf32>
    %cst_179 = arith.constant 0.797884583 : f32
    %149 = vector.broadcast %cst_179 : f32 to vector<1x32xf32>
    %150 = arith.mulf %149, %148 : vector<1x32xf32>
    %151 = math.tanh %150 : vector<1x32xf32>
    %cst_180 = arith.constant 1.000000e+00 : f32
    %152 = vector.broadcast %cst_180 : f32 to vector<1x32xf32>
    %153 = arith.addf %152, %151 : vector<1x32xf32>
    %154 = arith.mulf %143, %153 : vector<1x32xf32>
    %c0_181 = arith.constant 0 : index
    %c0_182 = arith.constant 0 : index
    %155 = vector.load %arg8[%c0_181, %c0_182] : memref<32x128xf32, #tpu.memory_space<vmem>>, vector<32x128xf32>
    %cst_183 = arith.constant dense<0.000000e+00> : vector<1x128xf32>
    %156 = tpu.matmul %154, %155, %cst_183 {dimension_numbers = #tpu.dot_dimension_numbers<[1], [0], [0], [1], [0, 0, 1, 1], [], []>} : vector<1x32xf32>, vector<32x128xf32>, vector<1x128xf32> -> vector<1x128xf32>
    %c0_184 = arith.constant 0 : index
    %c0_185 = arith.constant 0 : index
    %157 = vector.load %arg9[%c0_184, %c0_185] : memref<1x128xf32, #tpu.memory_space<vmem>>, vector<1x128xf32>
    %158 = arith.addf %156, %157 : vector<1x128xf32>
    %159 = math.tanh %158 : vector<1x128xf32>
    %cst_186 = arith.constant 0.899999976 : f32
    %160 = vector.broadcast %cst_186 : f32 to vector<1x128xf32>
    %161 = arith.mulf %160, %159 : vector<1x128xf32>
    %cst_187 = arith.constant 1.000000e+00 : f32
    %162 = vector.broadcast %cst_187 : f32 to vector<1x128xf32>
    %163 = arith.addf %161, %162 : vector<1x128xf32>
    %164 = vector.shape_cast %163 : vector<1x128xf32> to vector<1x1x128xf32>
    %c0_188 = arith.constant 0 : index
    %c0_189 = arith.constant 0 : index
    %c0_190 = arith.constant 0 : index
    %165 = vector.load %arg10[%c0_188, %c0_189, %c0_190] : memref<1x1x128xf32, #tpu.memory_space<vmem>>, vector<1x1x128xf32>
    tpu.vector_store %arg10[%c0_188, %c0_189, %c0_190], %164 {strides = array<i32>} : memref<1x1x128xf32, #tpu.memory_space<vmem>>, vector<1x1x128xf32>,
    return
  }
  func.func @transform_0(%arg0: i32) -> (i32, i32, i32, i32, i32) {
    %c0_i32 = arith.constant 0 : i32
    %c0_i32_0 = arith.constant 0 : i32
    %c0_i32_1 = arith.constant 0 : i32
    %c0_i32_2 = arith.constant 0 : i32
    %c0_i32_3 = arith.constant 0 : i32
    return %arg0, %c0_i32, %c0_i32_0, %c0_i32_1, %c0_i32_2 : i32, i32, i32, i32, i32
  }
  func.func @transform_1(%arg0: i32) -> (i32, i32, i32) {
    %c0_i32 = arith.constant 0 : i32
    %c0_i32_0 = arith.constant 0 : i32
    %c0_i32_1 = arith.constant 0 : i32
    %c0_i32_2 = arith.constant 0 : i32
    return %c0_i32, %c0_i32_0, %c0_i32_1 : i32, i32, i32
  }
  func.func @transform_2(%arg0: i32) -> (i32, i32) {
    %c0_i32 = arith.constant 0 : i32
    %c0_i32_0 = arith.constant 0 : i32
    %c0_i32_1 = arith.constant 0 : i32
    return %c0_i32, %c0_i32_0 : i32, i32
  }
  func.func @transform_3(%arg0: i32) -> (i32, i32, i32) {
    %c0_i32 = arith.constant 0 : i32
    %c0_i32_0 = arith.constant 0 : i32
    %c0_i32_1 = arith.constant 0 : i32
    %c0_i32_2 = arith.constant 0 : i32
    return %c0_i32, %c0_i32_0, %c0_i32_1 : i32, i32, i32
  }
  func.func @transform_4(%arg0: i32) -> (i32, i32) {
    %c0_i32 = arith.constant 0 : i32
    %c0_i32_0 = arith.constant 0 : i32
    %c0_i32_1 = arith.constant 0 : i32
    return %c0_i32, %c0_i32_0 : i32, i32
  }
  func.func @transform_5(%arg0: i32) -> (i32, i32) {
    %c0_i32 = arith.constant 0 : i32
    %c0_i32_0 = arith.constant 0 : i32
    %c0_i32_1 = arith.constant 0 : i32
    return %c0_i32, %c0_i32_0 : i32, i32
  }
  func.func @transform_6(%arg0: i32) -> (i32, i32) {
    %c0_i32 = arith.constant 0 : i32
    %c0_i32_0 = arith.constant 0 : i32
    %c0_i32_1 = arith.constant 0 : i32
    return %c0_i32, %c0_i32_0 : i32, i32
  }
  func.func @transform_7(%arg0: i32) -> (i32, i32) {
    %c0_i32 = arith.constant 0 : i32
    %c0_i32_0 = arith.constant 0 : i32
    %c0_i32_1 = arith.constant 0 : i32
    return %c0_i32, %c0_i32_0 : i32, i32
  }
  func.func @transform_8(%arg0: i32) -> (i32, i32) {
    %c0_i32 = arith.constant 0 : i32
    %c0_i32_0 = arith.constant 0 : i32
    %c0_i32_1 = arith.constant 0 : i32
    return %c0_i32, %c0_i32_0 : i32, i32
  }
  func.func @transform_9(%arg0: i32) -> (i32, i32, i32) {
    %c0_i32 = arith.constant 0 : i32
    %c0_i32_0 = arith.constant 0 : i32
    %c0_i32_1 = arith.constant 0 : i32
    return %arg0, %c0_i32, %c0_i32_0 : i32, i32, i32
  }
}

</mosaic_0001>

<llo_original>
// kernel: hw_scale_ratio.1
$region0: #{hw_scale_ratio.1}
  #allocation0 [shape = 'u32[]', space=smem, size = 0x4, offset = 0x4, fixed_abs, tag = 'smem constant byte address 0x4 - core index']
  #allocation1 [shape = 'u32[72,128]{1,0:T(1,128)}', space=vmem, size = 0x9000, scoped, tag = 'internal scratch']
  #allocation2 [shape = 'bf16[1,10,10,16]{3,2,1,0:T(8,128)(2,1)}', space=vmem, size = 0xa000, scoped, tag = 'scratch operand']
  %s0 = inlined_call_operand.vmem [shape: bf16[2,4,9,9,8], index: 0, kind: input, shape index: {}]
  %s1 = inlined_call_operand.vmem [shape: bf16[9,8,16], index: 1, kind: input, shape index: {}]
  %s2 = inlined_call_operand.vmem [shape: f32[1,16], index: 2, kind: input, shape index: {}]
  %s3 = inlined_call_operand.vmem [shape: bf16[9,16,16], index: 3, kind: input, shape index: {}]
  %s4 = inlined_call_operand.vmem [shape: f32[1,16], index: 4, kind: input, shape index: {}]
  %s5 = inlined_call_operand.vmem [shape: f32[16,32], index: 5, kind: input, shape index: {}]
  %s6 = inlined_call_operand.vmem [shape: f32[1,32], index: 6, kind: input, shape index: {}]
  %s7 = inlined_call_operand.vmem [shape: f32[32,128], index: 7, kind: input, shape index: {}]
  %s8 = inlined_call_operand.vmem [shape: f32[1,128], index: 8, kind: input, shape index: {}]
  %s9 = inlined_call_operand.vmem [shape: f32[2,1,128], index: 9, kind: output, shape index: {}]
  %s10 = sld [smem:[#allocation0]]
  $region69: #{hw_scale_ratio.1} parent=0
    _
  %s12 = ssub.s32 1, %s10
  %s13 = scalar_select 0, %s12, %s10
  loop: start=0, step=1, limit=4
  $region2: #{hw_scale_ratio.1} parent=0 // loop_pre_header
    _
  $region3: #{hw_scale_ratio.1} parent=0 // loop_header
    %s15 = sphi 0, %s19
    %p16 = scmp.ge.s32.totalorder %s15, 4
    %s25 = sphi 0, %s27
    %s28 = sphi 0, %s25
    %s29 = sphi 0, %s28
    %s45 = sphi 0, %s29
    %s49 = sphi 0, %s49
    %s51 = sphi 0, %s49
    %s52 = sphi 0, %s51
    %s66 = sphi 0, %s52
    %s70 = sphi 0, %s70
    %s72 = sphi 0, %s70
    %s73 = sphi 0, %s72
    %s87 = sphi 0, %s73
    %s91 = sphi 0, %s91
    %s93 = sphi 0, %s91
    %s94 = sphi 0, %s93
    %s108 = sphi 0, %s94
    %s112 = sphi 0, %s112
    %s114 = sphi 0, %s112
    %s115 = sphi 0, %s114
    %s129 = sphi 0, %s115
    %s133 = sphi 0, %s133
    %s135 = sphi 0, %s133
    %s136 = sphi 0, %s135
    %s150 = sphi 0, %s136
    %s154 = sphi 0, %s154
    %s156 = sphi 0, %s154
    %s157 = sphi 0, %s156
    %s171 = sphi 0, %s157
    %s175 = sphi 0, %s175
    %s177 = sphi 0, %s175
    %s178 = sphi 0, %s177
    %s192 = sphi 0, %s178
    %s196 = sphi 0, %s196
    %s198 = sphi 0, %s196
    %s199 = sphi 0, %s198
    %s213 = sphi 0, %s199
    %s219 = sphi 0, %s221
    %s222 = sphi 0, %s219
    %s223 = sphi 0, %s222
    %s239 = sphi 0, %s223
  $region4: #{hw_scale_ratio.1} parent=0 // loop_header_branch
    %18 = sbr.rel (%p16) target = $region8
  $region5: #{hw_scale_ratio.1} parent=0 // loop_body
    %s20 = ssub.s32 %s15, 1
    %s21 = ssub.s32 %s15, 2
    %s22 = sadd.s32 %s15, 1
    %s23 = ssub.s32 %s15, %s22
    %p24 = scmp.eq.s32.totalorder %s23, 0
    %s26 = sadd.s32 %s25, 1
    %s27 = scalar_select %p24, %s25, %s26
    %p30 = pneg %p24
    %p31 = scmp.eq.s32.totalorder %s15, 1
    %p32 = por %p30, %p31
    %p33 = scmp.ne.s32.totalorder %s25, %s28
    %p34 = scmp.eq.s32.totalorder %s15, 0
    %p35 = por %p33, %p34
    %p36 = scmp.ne.s32.totalorder %s25, %s28
    %p37 = scmp.eq.s32.totalorder %s20, 1
    %p38 = por %p36, %p37
    %p39 = scmp.ne.s32.totalorder %s28, %s29
    %p40 = scmp.eq.s32.totalorder %s20, 0
    %p41 = por %p39, %p40
    %p42 = scmp.ne.s32.totalorder %s28, %s29
    %p43 = scmp.eq.s32.totalorder %s21, 1
    %p44 = por %p42, %p43
    %p46 = scmp.ne.s32.totalorder %s29, %s45
    %p47 = scmp.eq.s32.totalorder %s21, 0
    %p48 = por %p46, %p47
    %s50 = sadd.s32 %s49, 1
    %p53 = scmp.eq.s32.totalorder %s15, 1
    %p54 = scmp.ne.s32.totalorder %s49, %s51
    %p55 = scmp.eq.s32.totalorder %s15, 0
    %p56 = por %p54, %p55
    %p57 = scmp.ne.s32.totalorder %s49, %s51
    %p58 = scmp.eq.s32.totalorder %s20, 1
    %p59 = por %p57, %p58
    %p60 = scmp.ne.s32.totalorder %s51, %s52
    %p61 = scmp.eq.s32.totalorder %s20, 0
    %p62 = por %p60, %p61
    %p63 = scmp.ne.s32.totalorder %s51, %s52
    %p64 = scmp.eq.s32.totalorder %s21, 1
    %p65 = por %p63, %p64
    %p67 = scmp.ne.s32.totalorder %s52, %s66
    %p68 = scmp.eq.s32.totalorder %s21, 0
    %p69 = por %p67, %p68
    %s71 = sadd.s32 %s70, 1
    %p74 = scmp.eq.s32.totalorder %s15, 1
    %p75 = scmp.ne.s32.totalorder %s70, %s72
    %p76 = scmp.eq.s32.totalorder %s15, 0
    %p77 = por %p75, %p76
    %p78 = scmp.ne.s32.totalorder %s70, %s72
    %p79 = scmp.eq.s32.totalorder %s20, 1
    %p80 = por %p78, %p79
    %p81 = scmp.ne.s32.totalorder %s72, %s73
    %p82 = scmp.eq.s32.totalorder %s20, 0
    %p83 = por %p81, %p82
    %p84 = scmp.ne.s32.totalorder %s72, %s73
    %p85 = scmp.eq.s32.totalorder %s21, 1
    %p86 = por %p84, %p85
    %p88 = scmp.ne.s32.totalorder %s73, %s87
    %p89 = scmp.eq.s32.totalorder %s21, 0
    %p90 = por %p88, %p89
    %s92 = sadd.s32 %s91, 1
    %p95 = scmp.eq.s32.totalorder %s15, 1
    %p96 = scmp.ne.s32.totalorder %s91, %s93
    %p97 = scmp.eq.s32.totalorder %s15, 0
    %p98 = por %p96, %p97
    %p99 = scmp.ne.s32.totalorder %s91, %s93
    %p100 = scmp.eq.s32.totalorder %s20, 1
    %p101 = por %p99, %p100
    %p102 = scmp.ne.s32.totalorder %s93, %s94
    %p103 = scmp.eq.s32.totalorder %s20, 0
    %p104 = por %p102, %p103
    %p105 = scmp.ne.s32.totalorder %s93, %s94
    %p106 = scmp.eq.s32.totalorder %s21, 1
    %p107 = por %p105, %p106
    %p109 = scmp.ne.s32.totalorder %s94, %s108
    %p110 = scmp.eq.s32.totalorder %s21, 0
    %p111 = por %p109, %p110
    %s113 = sadd.s32 %s112, 1
    %p116 = scmp.eq.s32.totalorder %s15, 1
    %p117 = scmp.ne.s32.totalorder %s112, %s114
    %p118 = scmp.eq.s32.totalorder %s15, 0
    %p119 = por %p117, %p118
    %p120 = scmp.ne.s32.totalorder %s112, %s114
    %p121 = scmp.eq.s32.totalorder %s20, 1
    %p122 = por %p120, %p121
    %p123 = scmp.ne.s32.totalorder %s114, %s115
    %p124 = scmp.eq.s32.totalorder %s20, 0
    %p125 = por %p123, %p124
    %p126 = scmp.ne.s32.totalorder %s114, %s115
    %p127 = scmp.eq.s32.totalorder %s21, 1
    %p128 = por %p126, %p127
    %p130 = scmp.ne.s32.totalorder %s115, %s129
    %p131 = scmp.eq.s32.totalorder %s21, 0
    %p132 = por %p130, %p131
    %s134 = sadd.s32 %s133, 1
    %p137 = scmp.eq.s32.totalorder %s15, 1
    %p138 = scmp.ne.s32.totalorder %s133, %s135
    %p139 = scmp.eq.s32.totalorder %s15, 0
    %p140 = por %p138, %p139
    %p141 = scmp.ne.s32.totalorder %s133, %s135
    %p142 = scmp.eq.s32.totalorder %s20, 1
    %p143 = por %p141, %p142
    %p144 = scmp.ne.s32.totalorder %s135, %s136
    %p145 = scmp.eq.s32.totalorder %s20, 0
    %p146 = por %p144, %p145
    %p147 = scmp.ne.s32.totalorder %s135, %s136
    %p148 = scmp.eq.s32.totalorder %s21, 1
    %p149 = por %p147, %p148
    %p151 = scmp.ne.s32.totalorder %s136, %s150
    %p152 = scmp.eq.s32.totalorder %s21, 0
    %p153 = por %p151, %p152
    %s155 = sadd.s32 %s154, 1
    %p158 = scmp.eq.s32.totalorder %s15, 1
    %p159 = scmp.ne.s32.totalorder %s154, %s156
    %p160 = scmp.eq.s32.totalorder %s15, 0
    %p161 = por %p159, %p160
    %p162 = scmp.ne.s32.totalorder %s154, %s156
    %p163 = scmp.eq.s32.totalorder %s20, 1
    %p164 = por %p162, %p163
    %p165 = scmp.ne.s32.totalorder %s156, %s157
    %p166 = scmp.eq.s32.totalorder %s20, 0
    %p167 = por %p165, %p166
    %p168 = scmp.ne.s32.totalorder %s156, %s157
    %p169 = scmp.eq.s32.totalorder %s21, 1
    %p170 = por %p168, %p169
    %p172 = scmp.ne.s32.totalorder %s157, %s171
    %p173 = scmp.eq.s32.totalorder %s21, 0
    %p174 = por %p172, %p173
    %s176 = sadd.s32 %s175, 1
    %p179 = scmp.eq.s32.totalorder %s15, 1
    %p180 = scmp.ne.s32.totalorder %s175, %s177
    %p181 = scmp.eq.s32.totalorder %s15, 0
    %p182 = por %p180, %p181
    %p183 = scmp.ne.s32.totalorder %s175, %s177
    %p184 = scmp.eq.s32.totalorder %s20, 1
    %p185 = por %p183, %p184
    %p186 = scmp.ne.s32.totalorder %s177, %s178
    %p187 = scmp.eq.s32.totalorder %s20, 0
    %p188 = por %p186, %p187
    %p189 = scmp.ne.s32.totalorder %s177, %s178
    %p190 = scmp.eq.s32.totalorder %s21, 1
    %p191 = por %p189, %p190
    %p193 = scmp.ne.s32.totalorder %s178, %s192
    %p194 = scmp.eq.s32.totalorder %s21, 0
    %p195 = por %p193, %p194
    %s197 = sadd.s32 %s196, 1
    %p200 = scmp.eq.s32.totalorder %s15, 1
    %p201 = scmp.ne.s32.totalorder %s196, %s198
    %p202 = scmp.eq.s32.totalorder %s15, 0
    %p203 = por %p201, %p202
    %p204 = scmp.ne.s32.totalorder %s196, %s198
    %p205 = scmp.eq.s32.totalorder %s20, 1
    %p206 = por %p204, %p205
    %p207 = scmp.ne.s32.totalorder %s198, %s199
    %p208 = scmp.eq.s32.totalorder %s20, 0
    %p209 = por %p207, %p208
    %p210 = scmp.ne.s32.totalorder %s198, %s199
    %p211 = scmp.eq.s32.totalorder %s21, 1
    %p212 = por %p210, %p211
    %p214 = scmp.ne.s32.totalorder %s199, %s213
    %p215 = scmp.eq.s32.totalorder %s21, 0
    %p216 = por %p214, %p215
    %s217 = ssub.s32 %s15, %s22
    %p218 = scmp.eq.s32.totalorder %s217, 0
    %s220 = sadd.s32 %s219, 1
    %s221 = scalar_select %p218, %s219, %s220
    %p224 = pneg %p218
    %p225 = scmp.eq.s32.totalorder %s15, 1
    %p226 = por %p224, %p225
    %p227 = scmp.ne.s32.totalorder %s219, %s222
    %p228 = scmp.eq.s32.totalorder %s15, 0
    %p229 = por %p227, %p228
    %p230 = scmp.ne.s32.totalorder %s219, %s222
    %p231 = scmp.eq.s32.totalorder %s20, 1
    %p232 = por %p230, %p231
    %p233 = scmp.ne.s32.totalorder %s222, %s223
    %p234 = scmp.eq.s32.totalorder %s20, 0
    %p235 = por %p233, %p234
    %p236 = scmp.ne.s32.totalorder %s222, %s223
    %p237 = scmp.eq.s32.totalorder %s21, 1
    %p238 = por %p236, %p237
    %p240 = scmp.ne.s32.totalorder %s223, %s239
    %p241 = scmp.eq.s32.totalorder %s21, 0
    %p242 = por %p240, %p241
    %p243 = scmp.le.s32.totalorder 1, %s15
    %p244 = scmp.lt.s32.totalorder %s15, 3
    %p245 = pnand %p243, %p244
    %p246 = pneg %p245
    // Predicated region
    $region9: #{hw_scale_ratio.1} parent=5 // pred_check
      _
    $region10: #{hw_scale_ratio.1} parent=5 // pred_check_branch
      %248 = sbr.rel (%p245) target = $region12
    $region11: #{hw_scale_ratio.1} parent=5 // pred_region
      %s249 = ssub.s32 %s15, 1
      // Predicated region
      $region13: #{hw_scale_ratio.1} parent=11 // pred_check
        %p250 = pneg %p62
      $region14: #{hw_scale_ratio.1} parent=11 // pred_check_branch
        %252 = sbr.rel (%p250) target = $region16
      $region15: #{hw_scale_ratio.1} parent=11 // pred_region
        _
      $region16: #{hw_scale_ratio.1} parent=11 // pred_fallthru
        _
      // Predicated region
      $region17: #{hw_scale_ratio.1} parent=11 // pred_check
        %p253 = pneg %p83
      $region18: #{hw_scale_ratio.1} parent=11 // pred_check_branch
        %255 = sbr.rel (%p253) target = $region20
      $region19: #{hw_scale_ratio.1} parent=11 // pred_region
        _
      $region20: #{hw_scale_ratio.1} parent=11 // pred_fallthru
        _
      // Predicated region
      $region21: #{hw_scale_ratio.1} parent=11 // pred_check
        %p256 = pneg %p104
      $region22: #{hw_scale_ratio.1} parent=11 // pred_check_branch
        %258 = sbr.rel (%p256) target = $region24
      $region23: #{hw_scale_ratio.1} parent=11 // pred_region
        _
      $region24: #{hw_scale_ratio.1} parent=11 // pred_fallthru
        _
      // Predicated region
      $region25: #{hw_scale_ratio.1} parent=11 // pred_check
        %p259 = pneg %p125
      $region26: #{hw_scale_ratio.1} parent=11 // pred_check_branch
        %261 = sbr.rel (%p259) target = $region28
      $region27: #{hw_scale_ratio.1} parent=11 // pred_region
        _
      $region28: #{hw_scale_ratio.1} parent=11 // pred_fallthru
        _
      // Predicated region
      $region29: #{hw_scale_ratio.1} parent=11 // pred_check
        %p262 = pneg %p146
      $region30: #{hw_scale_ratio.1} parent=11 // pred_check_branch
        %264 = sbr.rel (%p262) target = $region32
      $region31: #{hw_scale_ratio.1} parent=11 // pred_region
        _
      $region32: #{hw_scale_ratio.1} parent=11 // pred_fallthru
        _
      // Predicated region
      $region33: #{hw_scale_ratio.1} parent=11 // pred_check
        %p265 = pneg %p167
      $region34: #{hw_scale_ratio.1} parent=11 // pred_check_branch
        %267 = sbr.rel (%p265) target = $region36
      $region35: #{hw_scale_ratio.1} parent=11 // pred_region
        _
      $region36: #{hw_scale_ratio.1} parent=11 // pred_fallthru
        _
      // Predicated region
      $region37: #{hw_scale_ratio.1} parent=11 // pred_check
        %p268 = pneg %p188
      $region38: #{hw_scale_ratio.1} parent=11 // pred_check_branch
        %270 = sbr.rel (%p268) target = $region40
      $region39: #{hw_scale_ratio.1} parent=11 // pred_region
        _
      $region40: #{hw_scale_ratio.1} parent=11 // pred_fallthru
        _
      // Predicated region
      $region41: #{hw_scale_ratio.1} parent=11 // pred_check
        %p271 = pneg %p209
      $region42: #{hw_scale_ratio.1} parent=11 // pred_check_branch
        %273 = sbr.rel (%p271) target = $region44
      $region43: #{hw_scale_ratio.1} parent=11 // pred_region
        _
      $region44: #{hw_scale_ratio.1} parent=11 // pred_fallthru
        _
    $region12: #{hw_scale_ratio.1} parent=5 // pred_fallthru
      _
    %p274 = scmp.lt.s32.totalorder %s15, 2
    // Predicated region
    $region45: #{hw_scale_ratio.1} parent=5 // pred_check
      %p275 = pneg %p274
    $region46: #{hw_scale_ratio.1} parent=5 // pred_check_branch
      %277 = sbr.rel (%p275) target = $region48
    $region47: #{hw_scale_ratio.1} parent=5 // pred_region
      // Predicated region
      $region49: #{hw_scale_ratio.1} parent=47 // pred_check
        %p278 = pneg %p35
      $region50: #{hw_scale_ratio.1} parent=47 // pred_check_branch
        %280 = sbr.rel (%p278) target = $region52
      $region51: #{hw_scale_ratio.1} parent=47 // pred_region
        %p281 = scmp.lt.s32.totalorder %s15, 1
        %s282 = scalar_select %p281, %s15, 1
        %s283 = smul.addr %s282, 72
        %s284 = smul.addr %s283, 4
        %s285 = scalar_lea.vmem %s0, %s284
      $region52: #{hw_scale_ratio.1} parent=47 // pred_fallthru
        _
    $region48: #{hw_scale_ratio.1} parent=5 // pred_fallthru
      _
    %p286 = scmp.le.s32.totalorder 1, %s15
    %p287 = scmp.lt.s32.totalorder %s15, 3
    %p288 = pnand %p286, %p287
    %p289 = pneg %p288
    // Predicated region
    $region53: #{hw_scale_ratio.1} parent=5 // pred_check
      _
    $region54: #{hw_scale_ratio.1} parent=5 // pred_check_branch
      %291 = sbr.rel (%p288) target = $region56
    $region55: #{hw_scale_ratio.1} parent=5 // pred_region
      %s292 = ssub.s32 %s15, 1
      %p293 = scmp.lt.s32.totalorder %s20, 1
      %s294 = scalar_select %p293, %s20, 1
      %s295 = smul.addr %s294, 72
      %s296 = smul.addr %s295, 4
      %s297 = scalar_lea.vmem %s0, %s296
      %p298 = pneg %p41
      %p299 = pneg %p38
      %p300 = pneg %p62
      %p301 = pneg %p59
      %p302 = pneg %p83
      %p303 = pneg %p80
      %p304 = pneg %p104
      %p305 = pneg %p101
      %p306 = pneg %p125
      %p307 = pneg %p122
      %p308 = pneg %p146
      %p309 = pneg %p143
      %p310 = pneg %p167
      %p311 = pneg %p164
      %p312 = pneg %p188
      %p313 = pneg %p185
      %p314 = pneg %p209
      %p315 = pneg %p206
      %p316 = pneg %p235
      %p317 = pneg %p232
      %p318 = scmp.lt.s32.totalorder %s20, 1
      %s319 = scalar_select %p318, %s20, 1
      %s320 = scalar_lea.vmem %s9, %s319
      %p321 = scmp.lt.s32.totalorder %s20, 1
      %s322 = scalar_select %p321, %s20, 1
      %s323 = smul.addr %s322, 72
      %s324 = smul.addr %s323, 4
      %s325 = scalar_lea.vmem %s0, %s324
      %p326 = scmp.lt.s32.totalorder %s20, 1
      %s327 = scalar_select %p326, %s20, 1
      %s328 = scalar_lea.vmem %s9, %s327
      %v330 = vld [vmem:[%s325] sm:$0xf]
      %v331 = vld [vmem:[%s325 + $0x8] sm:$0xf]
      %v332 = vld [vmem:[%s325 + $0x10] sm:$0xf]
      %v333 = vld [vmem:[%s325 + $0x18] sm:$0xf]
      %v334 = vld [vmem:[%s325 + $0x20] sm:$0xf]
      %v335 = vld [vmem:[%s325 + $0x28] sm:$0xf]
      %v336 = vld [vmem:[%s325 + $0x30] sm:$0xf]
      %v337 = vld [vmem:[%s325 + $0x38] sm:$0xf]
      %v338 = vld [vmem:[%s1] sm:$0xf]
      %s339 = scalar_lea.vmem %s325, 72
      %v340 = vld [vmem:[%s339] sm:$0xf]
      %v341 = vld [vmem:[%s339 + $0x8] sm:$0xf]
      %v342 = vld [vmem:[%s339 + $0x10] sm:$0xf]
      %v343 = vld [vmem:[%s339 + $0x18] sm:$0xf]
      %v344 = vld [vmem:[%s339 + $0x20] sm:$0xf]
      %v345 = vld [vmem:[%s339 + $0x28] sm:$0xf]
      %v346 = vld [vmem:[%s339 + $0x30] sm:$0xf]
      %v347 = vld [vmem:[%s339 + $0x38] sm:$0xf]
      %s348 = scalar_lea.vmem %s1, 4
      %v349 = vld [vmem:[%s348] sm:$0xf]
      %v358 = vunpack.c.l.b16 %v340
      %v359 = vunpack.c.l.b16 %v341
      %v360 = vunpack.c.l.b16 %v342
      %v361 = vunpack.c.l.b16 %v343
      %v362 = vunpack.c.l.b16 %v344
      %v363 = vunpack.c.l.b16 %v345
      %v364 = vunpack.c.l.b16 %v346
      %v365 = vunpack.c.l.b16 %v347
      %v366 = vpack.c.b16 %v359, %v358
      %v367 = vpack.c.b16 %v361, %v360
      %v368 = vpack.c.b16 %v363, %v362
      %v369 = vpack.c.b16 %v365, %v364
      %vm370 = vcmask 64512
      %v372 = vsel %vm370, %v366, 0
      %v375 = vsel %vm370, %v367, 0
      %v378 = vsel %vm370, %v368, 0
      %v381 = vsel %vm370, %v369, 0
      %vm383 = vcmask 1043456
      %v385 = vsel %vm383, %v349, 0
      %387 = vmatpush.bf16.msra.mxu0 0
      %388 = vmatpush.bf16.msra.mxu0 0
      %389 = vmatpush.bf16.msra.mxu0 0
      %390 = vmatpush.bf16.msra.mxu0 0
      %391 = vmatpush.bf16.msra.mxu0 0
      %392 = vmatpush.bf16.msra.mxu0 0
      %393 = vmatpush.bf16.msra.mxu0 0
      %394 = vmatpush.bf16.msra.mxu0 %v385
      %395 = vmatmul.bf16.gmra.mxu0 %v372
      %v396 = vpop.f32.mrf.mxu0
      %v397 = vadd.f32 0.0, %v396
      %v398 = vpop.f32.mrf.mxu0
      %v399 = vadd.f32 0.0, %v398
      %400 = vmatmul.bf16.gmra.mxu0 %v375
      %v401 = vpop.f32.mrf.mxu0
      %v402 = vadd.f32 0.0, %v401
      %v403 = vpop.f32.mrf.mxu0
      %v404 = vadd.f32 0.0, %v403
      %405 = vmatmul.bf16.gmra.mxu0 %v378
      %v406 = vpop.f32.mrf.mxu0
      %v407 = vadd.f32 0.0, %v406
      %v408 = vpop.f32.mrf.mxu0
      %v409 = vadd.f32 0.0, %v408
      %410 = vmatmul.bf16.gmra.mxu0 %v381
      %v411 = vpop.f32.mrf.mxu0
      %v412 = vadd.f32 0.0, %v411
      %v413 = vpop.f32.mrf.mxu0
      %v414 = vadd.f32 0.0, %v413
      %415 = vdwg.mxu0
      %v424 = vunpack.c.l.b16 %v330
      %v425 = vunpack.c.l.b16 %v331
      %v426 = vunpack.c.l.b16 %v332
      %v427 = vunpack.c.l.b16 %v333
      %v428 = vunpack.c.l.b16 %v334
      %v429 = vunpack.c.l.b16 %v335
      %v430 = vunpack.c.l.b16 %v336
      %v431 = vunpack.c.l.b16 %v337
      %v432 = vpack.c.b16 %v425, %v424
      %v433 = vpack.c.b16 %v427, %v426
      %v434 = vpack.c.b16 %v429, %v428
      %v435 = vpack.c.b16 %v431, %v430
      %v437 = vsel %vm370, %v432, 0
      %v440 = vsel %vm370, %v433, 0
      %v443 = vsel %vm370, %v434, 0
      %v446 = vsel %vm370, %v435, 0
      %v449 = vsel %vm383, %v338, 0
      %451 = vmatpush.bf16.msra.mxu0 0
      %452 = vmatpush.bf16.msra.mxu0 0
      %453 = vmatpush.bf16.msra.mxu0 0
      %454 = vmatpush.bf16.msra.mxu0 0
      %455 = vmatpush.bf16.msra.mxu0 0
      %456 = vmatpush.bf16.msra.mxu0 0
      %457 = vmatpush.bf16.msra.mxu0 0
      %458 = vmatpush.bf16.msra.mxu0 %v449
      %459 = vmatmul.bf16.gmra.mxu0 %v437
      %v460 = vpop.f32.mrf.mxu0
      %v461 = vadd.f32 %v397, %v460
      %v462 = vpop.f32.mrf.mxu0
      %v463 = vadd.f32 %v399, %v462
      %464 = vmatmul.bf16.gmra.mxu0 %v440
      %v465 = vpop.f32.mrf.mxu0
      %v466 = vadd.f32 %v402, %v465
      %v467 = vpop.f32.mrf.mxu0
      %v468 = vadd.f32 %v404, %v467
      %469 = vmatmul.bf16.gmra.mxu0 %v443
      %v470 = vpop.f32.mrf.mxu0
      %v471 = vadd.f32 %v407, %v470
      %v472 = vpop.f32.mrf.mxu0
      %v473 = vadd.f32 %v409, %v472
      %474 = vmatmul.bf16.gmra.mxu0 %v446
      %v475 = vpop.f32.mrf.mxu0
      %v476 = vadd.f32 %v412, %v475
      %v477 = vpop.f32.mrf.mxu0
      %v478 = vadd.f32 %v414, %v477
      %479 = vdwg.mxu0
      %v480 = vld [vmem:[%s325] sm:$0xf]
      %v481 = vld [vmem:[%s325 + $0x4] sm:$0x1]
      %v482 = vld [vmem:[%s325 + $0x8] sm:$0xf]
      %v483 = vld [vmem:[%s325 + $0xc] sm:$0x1]
      %v484 = vld [vmem:[%s325 + $0x10] sm:$0xf]
      %v485 = vld [vmem:[%s325 + $0x14] sm:$0x1]
      %v486 = vld [vmem:[%s325 + $0x18] sm:$0xf]
      %v487 = vld [vmem:[%s325 + $0x1c] sm:$0x1]
      %v488 = vld [vmem:[%s325 + $0x20] sm:$0xf]
      %v489 = vld [vmem:[%s325 + $0x24] sm:$0x1]
      %v490 = vld [vmem:[%s325 + $0x28] sm:$0xf]
      %v491 = vld [vmem:[%s325 + $0x2c] sm:$0x1]
      %v492 = vld [vmem:[%s325 + $0x30] sm:$0xf]
      %v493 = vld [vmem:[%s325 + $0x34] sm:$0x1]
      %v494 = vld [vmem:[%s325 + $0x38] sm:$0xf]
      %v495 = vld [vmem:[%s325 + $0x3c] sm:$0x1]
      %vm496 = vsmask.f32 3328
      %vm497 = vsmask.f32 7440
      %vm498 = vmor %vm496, %vm497
      %v500 = vshrl.u32 %v480, 16
      %v502 = vrot.slane %v500, 4
      %v503 = vshll.u32 %v480, 16
      %v505 = vrot.slane %v503, 5
      %v506 = vor.u32 %v502, %v505
      %v507 = vrot.slane %v506, 4
      %v509 = vshll.u32 %v481, 16
      %v511 = vrot.slane %v509, 5
      %v512 = vsel %vm498, %v507, %v511
      %v514 = vshrl.u32 %v482, 16
      %v516 = vrot.slane %v514, 4
      %v517 = vshll.u32 %v482, 16
      %v519 = vrot.slane %v517, 5
      %v520 = vor.u32 %v516, %v519
      %v521 = vrot.slane %v520, 4
      %v523 = vshll.u32 %v483, 16
      %v525 = vrot.slane %v523, 5
      %v526 = vsel %vm498, %v521, %v525
      %v528 = vshrl.u32 %v484, 16
      %v530 = vrot.slane %v528, 4
      %v531 = vshll.u32 %v484, 16
      %v533 = vrot.slane %v531, 5
      %v534 = vor.u32 %v530, %v533
      %v535 = vrot.slane %v534, 4
      %v537 = vshll.u32 %v485, 16
      %v539 = vrot.slane %v537, 5
      %v540 = vsel %vm498, %v535, %v539
      %v542 = vshrl.u32 %v486, 16
      %v544 = vrot.slane %v542, 4
      %v545 = vshll.u32 %v486, 16
      %v547 = vrot.slane %v545, 5
      %v548 = vor.u32 %v544, %v547
      %v549 = vrot.slane %v548, 4
      %v551 = vshll.u32 %v487, 16
      %v553 = vrot.slane %v551, 5
      %v554 = vsel %vm498, %v549, %v553
      %v556 = vshrl.u32 %v488, 16
      %v558 = vrot.slane %v556, 4
      %v559 = vshll.u32 %v488, 16
      %v561 = vrot.slane %v559, 5
      %v562 = vor.u32 %v558, %v561
      %v563 = vrot.slane %v562, 4
      %v565 = vshll.u32 %v489, 16
      %v567 = vrot.slane %v565, 5
      %v568 = vsel %vm498, %v563, %v567
      %v570 = vshrl.u32 %v490, 16
      %v572 = vrot.slane %v570, 4
      %v573 = vshll.u32 %v490, 16
      %v575 = vrot.slane %v573, 5
      %v576 = vor.u32 %v572, %v575
      %v577 = vrot.slane %v576, 4
      %v579 = vshll.u32 %v491, 16
      %v581 = vrot.slane %v579, 5
      %v582 = vsel %vm498, %v577, %v581
      %v584 = vshrl.u32 %v492, 16
      %v586 = vrot.slane %v584, 4
      %v587 = vshll.u32 %v492, 16
      %v589 = vrot.slane %v587, 5
      %v590 = vor.u32 %v586, %v589
      %v591 = vrot.slane %v590, 4
      %v593 = vshll.u32 %v493, 16
      %v595 = vrot.slane %v593, 5
      %v596 = vsel %vm498, %v591, %v595
      %v598 = vshrl.u32 %v494, 16
      %v600 = vrot.slane %v598, 4
      %v601 = vshll.u32 %v494, 16
      %v603 = vrot.slane %v601, 5
      %v604 = vor.u32 %v600, %v603
      %v605 = vrot.slane %v604, 4
      %v607 = vshll.u32 %v495, 16
      %v609 = vrot.slane %v607, 5
      %v610 = vsel %vm498, %v605, %v609
      %s611 = scalar_lea.vmem %s1, 8
      %v612 = vld [vmem:[%s611] sm:$0xf]
      %v613 = vunpack.c.l.b16 %v512
      %v614 = vunpack.c.l.b16 %v526
      %v615 = vunpack.c.l.b16 %v540
      %v616 = vunpack.c.l.b16 %v554
      %v617 = vunpack.c.l.b16 %v568
      %v618 = vunpack.c.l.b16 %v582
      %v619 = vunpack.c.l.b16 %v596
      %v620 = vunpack.c.l.b16 %v610
      %v621 = vpack.c.b16 %v614, %v613
      %v622 = vpack.c.b16 %v616, %v615
      %v623 = vpack.c.b16 %v618, %v617
      %v624 = vpack.c.b16 %v620, %v619
      %v626 = vsel %vm370, %v621, 0
      %v629 = vsel %vm370, %v622, 0
      %v632 = vsel %vm370, %v623, 0
      %v635 = vsel %vm370, %v624, 0
      %v638 = vsel %vm383, %v612, 0
      %640 = vmatpush.bf16.msra.mxu0 0
      %641 = vmatpush.bf16.msra.mxu0 0
      %642 = vmatpush.bf16.msra.mxu0 0
      %643 = vmatpush.bf16.msra.mxu0 0
      %644 = vmatpush.bf16.msra.mxu0 0
      %645 = vmatpush.bf16.msra.mxu0 0
      %646 = vmatpush.bf16.msra.mxu0 0
      %647 = vmatpush.bf16.msra.mxu0 %v638
      %648 = vmatmul.bf16.gmra.mxu0 %v626
      %v649 = vpop.f32.mrf.mxu0
      %v650 = vadd.f32 0.0, %v649
      %v651 = vpop.f32.mrf.mxu0
      %v652 = vadd.f32 0.0, %v651
      %653 = vmatmul.bf16.gmra.mxu0 %v629
      %v654 = vpop.f32.mrf.mxu0
      %v655 = vadd.f32 0.0, %v654
      %v656 = vpop.f32.mrf.mxu0
      %v657 = vadd.f32 0.0, %v656
      %658 = vmatmul.bf16.gmra.mxu0 %v632
      %v659 = vpop.f32.mrf.mxu0
      %v660 = vadd.f32 0.0, %v659
      %v661 = vpop.f32.mrf.mxu0
      %v662 = vadd.f32 0.0, %v661
      %663 = vmatmul.bf16.gmra.mxu0 %v635
      %v664 = vpop.f32.mrf.mxu0
      %v665 = vadd.f32 0.0, %v664
      %v666 = vpop.f32.mrf.mxu0
      %v667 = vadd.f32 0.0, %v666
      %668 = vdwg.mxu0
      %v669 = vadd.f32 %v461, %v650
      %v670 = vadd.f32 %v463, %v652
      %v671 = vadd.f32 %v466, %v655
      %v672 = vadd.f32 %v468, %v657
      %v673 = vadd.f32 %v471, %v660
      %v674 = vadd.f32 %v473, %v662
      %v675 = vadd.f32 %v476, %v665
      %v676 = vadd.f32 %v478, %v667
      %s677 = scalar_lea.vmem %s325, 144
      %v678 = vld [vmem:[%s677] sm:$0xf]
      %v679 = vld [vmem:[%s677 + $0x8] sm:$0xf]
      %v680 = vld [vmem:[%s677 + $0x10] sm:$0xf]
      %v681 = vld [vmem:[%s677 + $0x18] sm:$0xf]
      %v682 = vld [vmem:[%s677 + $0x20] sm:$0xf]
      %v683 = vld [vmem:[%s677 + $0x28] sm:$0xf]
      %v684 = vld [vmem:[%s677 + $0x30] sm:$0xf]
      %v685 = vld [vmem:[%s677 + $0x38] sm:$0xf]
      %s686 = scalar_lea.vmem %s1, 12
      %v687 = vld [vmem:[%s686] sm:$0xf]
      %v696 = vunpack.c.l.b16 %v678
      %v697 = vunpack.c.l.b16 %v679
      %v698 = vunpack.c.l.b16 %v680
      %v699 = vunpack.c.l.b16 %v681
      %v700 = vunpack.c.l.b16 %v682
      %v701 = vunpack.c.l.b16 %v683
      %v702 = vunpack.c.l.b16 %v684
      %v703 = vunpack.c.l.b16 %v685
      %v704 = vpack.c.b16 %v697, %v696
      %v705 = vpack.c.b16 %v699, %v698
      %v706 = vpack.c.b16 %v701, %v700
      %v707 = vpack.c.b16 %v703, %v702
      %v709 = vsel %vm370, %v704, 0
      %v712 = vsel %vm370, %v705, 0
      %v715 = vsel %vm370, %v706, 0
      %v718 = vsel %vm370, %v707, 0
      %v721 = vsel %vm383, %v687, 0
      %723 = vmatpush.bf16.msra.mxu0 0
      %724 = vmatpush.bf16.msra.mxu0 0
      %725 = vmatpush.bf16.msra.mxu0 0
      %726 = vmatpush.bf16.msra.mxu0 0
      %727 = vmatpush.bf16.msra.mxu0 0
      %728 = vmatpush.bf16.msra.mxu0 0
      %729 = vmatpush.bf16.msra.mxu0 0
      %730 = vmatpush.bf16.msra.mxu0 %v721
      %731 = vmatmul.bf16.gmra.mxu0 %v709
      %v732 = vpop.f32.mrf.mxu0
      %v733 = vadd.f32 0.0, %v732
      %v734 = vpop.f32.mrf.mxu0
      %v735 = vadd.f32 0.0, %v734
      %736 = vmatmul.bf16.gmra.mxu0 %v712
      %v737 = vpop.f32.mrf.mxu0
      %v738 = vadd.f32 0.0, %v737
      %v739 = vpop.f32.mrf.mxu0
      %v740 = vadd.f32 0.0, %v739
      %741 = vmatmul.bf16.gmra.mxu0 %v715
      %v742 = vpop.f32.mrf.mxu0
      %v743 = vadd.f32 0.0, %v742
      %v744 = vpop.f32.mrf.mxu0
      %v745 = vadd.f32 0.0, %v744
      %746 = vmatmul.bf16.gmra.mxu0 %v718
      %v747 = vpop.f32.mrf.mxu0
      %v748 = vadd.f32 0.0, %v747
      %v749 = vpop.f32.mrf.mxu0
      %v750 = vadd.f32 0.0, %v749
      %751 = vdwg.mxu0
      %v752 = vadd.f32 %v669, %v733
      %v753 = vadd.f32 %v670, %v735
      %v754 = vadd.f32 %v671, %v738
      %v755 = vadd.f32 %v672, %v740
      %v756 = vadd.f32 %v673, %v743
      %v757 = vadd.f32 %v674, %v745
      %v758 = vadd.f32 %v675, %v748
      %v759 = vadd.f32 %v676, %v750
      %s760 = scalar_lea.vmem %s325, 216
      %v761 = vld [vmem:[%s760] sm:$0xf]
      %v762 = vld [vmem:[%s760 + $0x8] sm:$0xf]
      %v763 = vld [vmem:[%s760 + $0x10] sm:$0xf]
      %v764 = vld [vmem:[%s760 + $0x18] sm:$0xf]
      %v765 = vld [vmem:[%s760 + $0x20] sm:$0xf]
      %v766 = vld [vmem:[%s760 + $0x28] sm:$0xf]
      %v767 = vld [vmem:[%s760 + $0x30] sm:$0xf]
      %v768 = vld [vmem:[%s760 + $0x38] sm:$0xf]
      %s769 = scalar_lea.vmem %s1, 16
      %v770 = vld [vmem:[%s769] sm:$0xf]
      %v779 = vunpack.c.l.b16 %v761
      %v780 = vunpack.c.l.b16 %v762
      %v781 = vunpack.c.l.b16 %v763
      %v782 = vunpack.c.l.b16 %v764
      %v783 = vunpack.c.l.b16 %v765
      %v784 = vunpack.c.l.b16 %v766
      %v785 = vunpack.c.l.b16 %v767
      %v786 = vunpack.c.l.b16 %v768
      %v787 = vpack.c.b16 %v780, %v779
      %v788 = vpack.c.b16 %v782, %v781
      %v789 = vpack.c.b16 %v784, %v783
      %v790 = vpack.c.b16 %v786, %v785
      %v792 = vsel %vm370, %v787, 0
      %v795 = vsel %vm370, %v788, 0
      %v798 = vsel %vm370, %v789, 0
      %v801 = vsel %vm370, %v790, 0
      %v804 = vsel %vm383, %v770, 0
      %806 = vmatpush.bf16.msra.mxu0 0
      %807 = vmatpush.bf16.msra.mxu0 0
      %808 = vmatpush.bf16.msra.mxu0 0
      %809 = vmatpush.bf16.msra.mxu0 0
      %810 = vmatpush.bf16.msra.mxu0 0
      %811 = vmatpush.bf16.msra.mxu0 0
      %812 = vmatpush.bf16.msra.mxu0 0
      %813 = vmatpush.bf16.msra.mxu0 %v804
      %814 = vmatmul.bf16.gmra.mxu0 %v792
      %v815 = vpop.f32.mrf.mxu0
      %v816 = vadd.f32 0.0, %v815
      %v817 = vpop.f32.mrf.mxu0
      %v818 = vadd.f32 0.0, %v817
      %819 = vmatmul.bf16.gmra.mxu0 %v795
      %v820 = vpop.f32.mrf.mxu0
      %v821 = vadd.f32 0.0, %v820
      %v822 = vpop.f32.mrf.mxu0
      %v823 = vadd.f32 0.0, %v822
      %824 = vmatmul.bf16.gmra.mxu0 %v798
      %v825 = vpop.f32.mrf.mxu0
      %v826 = vadd.f32 0.0, %v825
      %v827 = vpop.f32.mrf.mxu0
      %v828 = vadd.f32 0.0, %v827
      %829 = vmatmul.bf16.gmra.mxu0 %v801
      %v830 = vpop.f32.mrf.mxu0
      %v831 = vadd.f32 0.0, %v830
      %v832 = vpop.f32.mrf.mxu0
      %v833 = vadd.f32 0.0, %v832
      %834 = vdwg.mxu0
      %v835 = vadd.f32 %v752, %v816
      %v836 = vadd.f32 %v753, %v818
      %v837 = vadd.f32 %v754, %v821
      %v838 = vadd.f32 %v755, %v823
      %v839 = vadd.f32 %v756, %v826
      %v840 = vadd.f32 %v757, %v828
      %v841 = vadd.f32 %v758, %v831
      %v842 = vadd.f32 %v759, %v833
      %v843 = vld [vmem:[%s677] sm:$0xf]
      %v844 = vld [vmem:[%s677 + $0x4] sm:$0x1]
      %v845 = vld [vmem:[%s677 + $0x8] sm:$0xf]
      %v846 = vld [vmem:[%s677 + $0xc] sm:$0x1]
      %v847 = vld [vmem:[%s677 + $0x10] sm:$0xf]
      %v848 = vld [vmem:[%s677 + $0x14] sm:$0x1]
      %v849 = vld [vmem:[%s677 + $0x18] sm:$0xf]
      %v850 = vld [vmem:[%s677 + $0x1c] sm:$0x1]
      %v851 = vld [vmem:[%s677 + $0x20] sm:$0xf]
      %v852 = vld [vmem:[%s677 + $0x24] sm:$0x1]
      %v853 = vld [vmem:[%s677 + $0x28] sm:$0xf]
      %v854 = vld [vmem:[%s677 + $0x2c] sm:$0x1]
      %v855 = vld [vmem:[%s677 + $0x30] sm:$0xf]
      %v856 = vld [vmem:[%s677 + $0x34] sm:$0x1]
      %v857 = vld [vmem:[%s677 + $0x38] sm:$0xf]
      %v858 = vld [vmem:[%s677 + $0x3c] sm:$0x1]
      %v860 = vshrl.u32 %v843, 16
      %v862 = vrot.slane %v860, 4
      %v863 = vshll.u32 %v843, 16
      %v865 = vrot.slane %v863, 5
      %v866 = vor.u32 %v862, %v865
      %v867 = vrot.slane %v866, 4
      %v869 = vshll.u32 %v844, 16
      %v871 = vrot.slane %v869, 5
      %v872 = vsel %vm498, %v867, %v871
      %v874 = vshrl.u32 %v845, 16
      %v876 = vrot.slane %v874, 4
      %v877 = vshll.u32 %v845, 16
      %v879 = vrot.slane %v877, 5
      %v880 = vor.u32 %v876, %v879
      %v881 = vrot.slane %v880, 4
      %v883 = vshll.u32 %v846, 16
      %v885 = vrot.slane %v883, 5
      %v886 = vsel %vm498, %v881, %v885
      %v888 = vshrl.u32 %v847, 16
      %v890 = vrot.slane %v888, 4
      %v891 = vshll.u32 %v847, 16
      %v893 = vrot.slane %v891, 5
      %v894 = vor.u32 %v890, %v893
      %v895 = vrot.slane %v894, 4
      %v897 = vshll.u32 %v848, 16
      %v899 = vrot.slane %v897, 5
      %v900 = vsel %vm498, %v895, %v899
      %v902 = vshrl.u32 %v849, 16
      %v904 = vrot.slane %v902, 4
      %v905 = vshll.u32 %v849, 16
      %v907 = vrot.slane %v905, 5
      %v908 = vor.u32 %v904, %v907
      %v909 = vrot.slane %v908, 4
      %v911 = vshll.u32 %v850, 16
      %v913 = vrot.slane %v911, 5
      %v914 = vsel %vm498, %v909, %v913
      %v916 = vshrl.u32 %v851, 16
      %v918 = vrot.slane %v916, 4
      %v919 = vshll.u32 %v851, 16
      %v921 = vrot.slane %v919, 5
      %v922 = vor.u32 %v918, %v921
      %v923 = vrot.slane %v922, 4
      %v925 = vshll.u32 %v852, 16
      %v927 = vrot.slane %v925, 5
      %v928 = vsel %vm498, %v923, %v927
      %v930 = vshrl.u32 %v853, 16
      %v932 = vrot.slane %v930, 4
      %v933 = vshll.u32 %v853, 16
      %v935 = vrot.slane %v933, 5
      %v936 = vor.u32 %v932, %v935
      %v937 = vrot.slane %v936, 4
      %v939 = vshll.u32 %v854, 16
      %v941 = vrot.slane %v939, 5
      %v942 = vsel %vm498, %v937, %v941
      %v944 = vshrl.u32 %v855, 16
      %v946 = vrot.slane %v944, 4
      %v947 = vshll.u32 %v855, 16
      %v949 = vrot.slane %v947, 5
      %v950 = vor.u32 %v946, %v949
      %v951 = vrot.slane %v950, 4
      %v953 = vshll.u32 %v856, 16
      %v955 = vrot.slane %v953, 5
      %v956 = vsel %vm498, %v951, %v955
      %v958 = vshrl.u32 %v857, 16
      %v960 = vrot.slane %v958, 4
      %v961 = vshll.u32 %v857, 16
      %v963 = vrot.slane %v961, 5
      %v964 = vor.u32 %v960, %v963
      %v965 = vrot.slane %v964, 4
      %v967 = vshll.u32 %v858, 16
      %v969 = vrot.slane %v967, 5
      %v970 = vsel %vm498, %v965, %v969
      %s971 = scalar_lea.vmem %s1, 20
      %v972 = vld [vmem:[%s971] sm:$0xf]
      %v973 = vunpack.c.l.b16 %v872
      %v974 = vunpack.c.l.b16 %v886
      %v975 = vunpack.c.l.b16 %v900
      %v976 = vunpack.c.l.b16 %v914
      %v977 = vunpack.c.l.b16 %v928
      %v978 = vunpack.c.l.b16 %v942
      %v979 = vunpack.c.l.b16 %v956
      %v980 = vunpack.c.l.b16 %v970
      %v981 = vpack.c.b16 %v974, %v973
      %v982 = vpack.c.b16 %v976, %v975
      %v983 = vpack.c.b16 %v978, %v977
      %v984 = vpack.c.b16 %v980, %v979
      %v986 = vsel %vm370, %v981, 0
      %v989 = vsel %vm370, %v982, 0
      %v992 = vsel %vm370, %v983, 0
      %v995 = vsel %vm370, %v984, 0
      %v998 = vsel %vm383, %v972, 0
      %1000 = vmatpush.bf16.msra.mxu0 0
      %1001 = vmatpush.bf16.msra.mxu0 0
      %1002 = vmatpush.bf16.msra.mxu0 0
      %1003 = vmatpush.bf16.msra.mxu0 0
      %1004 = vmatpush.bf16.msra.mxu0 0
      %1005 = vmatpush.bf16.msra.mxu0 0
      %1006 = vmatpush.bf16.msra.mxu0 0
      %1007 = vmatpush.bf16.msra.mxu0 %v998
      %1008 = vmatmul.bf16.gmra.mxu0 %v986
      %v1009 = vpop.f32.mrf.mxu0
      %v1010 = vadd.f32 0.0, %v1009
      %v1011 = vpop.f32.mrf.mxu0
      %v1012 = vadd.f32 0.0, %v1011
      %1013 = vmatmul.bf16.gmra.mxu0 %v989
      %v1014 = vpop.f32.mrf.mxu0
      %v1015 = vadd.f32 0.0, %v1014
      %v1016 = vpop.f32.mrf.mxu0
      %v1017 = vadd.f32 0.0, %v1016
      %1018 = vmatmul.bf16.gmra.mxu0 %v992
      %v1019 = vpop.f32.mrf.mxu0
      %v1020 = vadd.f32 0.0, %v1019
      %v1021 = vpop.f32.mrf.mxu0
      %v1022 = vadd.f32 0.0, %v1021
      %1023 = vmatmul.bf16.gmra.mxu0 %v995
      %v1024 = vpop.f32.mrf.mxu0
      %v1025 = vadd.f32 0.0, %v1024
      %v1026 = vpop.f32.mrf.mxu0
      %v1027 = vadd.f32 0.0, %v1026
      %1028 = vdwg.mxu0
      %v1029 = vadd.f32 %v835, %v1010
      %v1030 = vadd.f32 %v836, %v1012
      %v1031 = vadd.f32 %v837, %v1015
      %v1032 = vadd.f32 %v838, %v1017
      %v1033 = vadd.f32 %v839, %v1020
      %v1034 = vadd.f32 %v840, %v1022
      %v1035 = vadd.f32 %v841, %v1025
      %v1036 = vadd.f32 %v842, %v1027
      %s1037 = scalar_lea.vmem %s325, 8
      %v1038 = vld [vmem:[%s1037] sm:$0xf]
      %v1039 = vld [vmem:[%s1037 + $0x8] sm:$0xf]
      %v1040 = vld [vmem:[%s1037 + $0x10] sm:$0xf]
      %v1041 = vld [vmem:[%s1037 + $0x18] sm:$0xf]
      %v1042 = vld [vmem:[%s1037 + $0x20] sm:$0xf]
      %v1043 = vld [vmem:[%s1037 + $0x28] sm:$0xf]
      %v1044 = vld [vmem:[%s1037 + $0x30] sm:$0xf]
      %v1045 = vld [vmem:[%s1037 + $0x38] sm:$0xf]
      %s1046 = scalar_lea.vmem %s1, 24
      %v1047 = vld [vmem:[%s1046] sm:$0xf]
      %v1056 = vunpack.c.l.b16 %v1038
      %v1057 = vunpack.c.l.b16 %v1039
      %v1058 = vunpack.c.l.b16 %v1040
      %v1059 = vunpack.c.l.b16 %v1041
      %v1060 = vunpack.c.l.b16 %v1042
      %v1061 = vunpack.c.l.b16 %v1043
      %v1062 = vunpack.c.l.b16 %v1044
      %v1063 = vunpack.c.l.b16 %v1045
      %v1064 = vpack.c.b16 %v1057, %v1056
      %v1065 = vpack.c.b16 %v1059, %v1058
      %v1066 = vpack.c.b16 %v1061, %v1060
      %v1067 = vpack.c.b16 %v1063, %v1062
      %v1069 = vsel %vm370, %v1064, 0
      %v1072 = vsel %vm370, %v1065, 0
      %v1075 = vsel %vm370, %v1066, 0
      %v1078 = vsel %vm370, %v1067, 0
      %v1081 = vsel %vm383, %v1047, 0
      %1083 = vmatpush.bf16.msra.mxu0 0
      %1084 = vmatpush.bf16.msra.mxu0 0
      %1085 = vmatpush.bf16.msra.mxu0 0
      %1086 = vmatpush.bf16.msra.mxu0 0
      %1087 = vmatpush.bf16.msra.mxu0 0
      %1088 = vmatpush.bf16.msra.mxu0 0
      %1089 = vmatpush.bf16.msra.mxu0 0
      %1090 = vmatpush.bf16.msra.mxu0 %v1081
      %1091 = vmatmul.bf16.gmra.mxu0 %v1069
      %v1092 = vpop.f32.mrf.mxu0
      %v1093 = vadd.f32 0.0, %v1092
      %v1094 = vpop.f32.mrf.mxu0
      %v1095 = vadd.f32 0.0, %v1094
      %1096 = vmatmul.bf16.gmra.mxu0 %v1072
      %v1097 = vpop.f32.mrf.mxu0
      %v1098 = vadd.f32 0.0, %v1097
      %v1099 = vpop.f32.mrf.mxu0
      %v1100 = vadd.f32 0.0, %v1099
      %1101 = vmatmul.bf16.gmra.mxu0 %v1075
      %v1102 = vpop.f32.mrf.mxu0
      %v1103 = vadd.f32 0.0, %v1102
      %v1104 = vpop.f32.mrf.mxu0
      %v1105 = vadd.f32 0.0, %v1104
      %1106 = vmatmul.bf16.gmra.mxu0 %v1078
      %v1107 = vpop.f32.mrf.mxu0
      %v1108 = vadd.f32 0.0, %v1107
      %v1109 = vpop.f32.mrf.mxu0
      %v1110 = vadd.f32 0.0, %v1109
      %1111 = vdwg.mxu0
      %v1112 = vadd.f32 %v1029, %v1093
      %v1113 = vadd.f32 %v1030, %v1095
      %v1114 = vadd.f32 %v1031, %v1098
      %v1115 = vadd.f32 %v1032, %v1100
      %v1116 = vadd.f32 %v1033, %v1103
      %v1117 = vadd.f32 %v1034, %v1105
      %v1118 = vadd.f32 %v1035, %v1108
      %v1119 = vadd.f32 %v1036, %v1110
      %s1120 = scalar_lea.vmem %s325, 80
      %v1121 = vld [vmem:[%s1120] sm:$0xf]
      %v1122 = vld [vmem:[%s1120 + $0x8] sm:$0xf]
      %v1123 = vld [vmem:[%s1120 + $0x10] sm:$0xf]
      %v1124 = vld [vmem:[%s1120 + $0x18] sm:$0xf]
      %v1125 = vld [vmem:[%s1120 + $0x20] sm:$0xf]
      %v1126 = vld [vmem:[%s1120 + $0x28] sm:$0xf]
      %v1127 = vld [vmem:[%s1120 + $0x30] sm:$0xf]
      %v1128 = vld [vmem:[%s1120 + $0x38] sm:$0xf]
      %s1129 = scalar_lea.vmem %s1, 28
      %v1130 = vld [vmem:[%s1129] sm:$0xf]
      %v1139 = vunpack.c.l.b16 %v1121
      %v1140 = vunpack.c.l.b16 %v1122
      %v1141 = vunpack.c.l.b16 %v1123
      %v1142 = vunpack.c.l.b16 %v1124
      %v1143 = vunpack.c.l.b16 %v1125
      %v1144 = vunpack.c.l.b16 %v1126
      %v1145 = vunpack.c.l.b16 %v1127
      %v1146 = vunpack.c.l.b16 %v1128
      %v1147 = vpack.c.b16 %v1140, %v1139
      %v1148 = vpack.c.b16 %v1142, %v1141
      %v1149 = vpack.c.b16 %v1144, %v1143
      %v1150 = vpack.c.b16 %v1146, %v1145
      %v1152 = vsel %vm370, %v1147, 0
      %v1155 = vsel %vm370, %v1148, 0
      %v1158 = vsel %vm370, %v1149, 0
      %v1161 = vsel %vm370, %v1150, 0
      %v1164 = vsel %vm383, %v1130, 0
      %1166 = vmatpush.bf16.msra.mxu0 0
      %1167 = vmatpush.bf16.msra.mxu0 0
      %1168 = vmatpush.bf16.msra.mxu0 0
      %1169 = vmatpush.bf16.msra.mxu0 0
      %1170 = vmatpush.bf16.msra.mxu0 0
      %1171 = vmatpush.bf16.msra.mxu0 0
      %1172 = vmatpush.bf16.msra.mxu0 0
      %1173 = vmatpush.bf16.msra.mxu0 %v1164
      %1174 = vmatmul.bf16.gmra.mxu0 %v1152
      %v1175 = vpop.f32.mrf.mxu0
      %v1176 = vadd.f32 0.0, %v1175
      %v1177 = vpop.f32.mrf.mxu0
      %v1178 = vadd.f32 0.0, %v1177
      %1179 = vmatmul.bf16.gmra.mxu0 %v1155
      %v1180 = vpop.f32.mrf.mxu0
      %v1181 = vadd.f32 0.0, %v1180
      %v1182 = vpop.f32.mrf.mxu0
      %v1183 = vadd.f32 0.0, %v1182
      %1184 = vmatmul.bf16.gmra.mxu0 %v1158
      %v1185 = vpop.f32.mrf.mxu0
      %v1186 = vadd.f32 0.0, %v1185
      %v1187 = vpop.f32.mrf.mxu0
      %v1188 = vadd.f32 0.0, %v1187
      %1189 = vmatmul.bf16.gmra.mxu0 %v1161
      %v1190 = vpop.f32.mrf.mxu0
      %v1191 = vadd.f32 0.0, %v1190
      %v1192 = vpop.f32.mrf.mxu0
      %v1193 = vadd.f32 0.0, %v1192
      %1194 = vdwg.mxu0
      %v1195 = vadd.f32 %v1112, %v1176
      %v1196 = vadd.f32 %v1113, %v1178
      %v1197 = vadd.f32 %v1114, %v1181
      %v1198 = vadd.f32 %v1115, %v1183
      %v1199 = vadd.f32 %v1116, %v1186
      %v1200 = vadd.f32 %v1117, %v1188
      %v1201 = vadd.f32 %v1118, %v1191
      %v1202 = vadd.f32 %v1119, %v1193
      %v1203 = vld [vmem:[%s1037] sm:$0xf]
      %v1204 = vld [vmem:[%s1037 + $0x4] sm:$0x1]
      %v1205 = vld [vmem:[%s1037 + $0x8] sm:$0xf]
      %v1206 = vld [vmem:[%s1037 + $0xc] sm:$0x1]
      %v1207 = vld [vmem:[%s1037 + $0x10] sm:$0xf]
      %v1208 = vld [vmem:[%s1037 + $0x14] sm:$0x1]
      %v1209 = vld [vmem:[%s1037 + $0x18] sm:$0xf]
      %v1210 = vld [vmem:[%s1037 + $0x1c] sm:$0x1]
      %v1211 = vld [vmem:[%s1037 + $0x20] sm:$0xf]
      %v1212 = vld [vmem:[%s1037 + $0x24] sm:$0x1]
      %v1213 = vld [vmem:[%s1037 + $0x28] sm:$0xf]
      %v1214 = vld [vmem:[%s1037 + $0x2c] sm:$0x1]
      %v1215 = vld [vmem:[%s1037 + $0x30] sm:$0xf]
      %v1216 = vld [vmem:[%s1037 + $0x34] sm:$0x1]
      %v1217 = vld [vmem:[%s1037 + $0x38] sm:$0xf]
      %v1218 = vld [vmem:[%s1037 + $0x3c] sm:$0x1]
      %v1220 = vshrl.u32 %v1203, 16
      %v1222 = vrot.slane %v1220, 4
      %v1223 = vshll.u32 %v1203, 16
      %v1225 = vrot.slane %v1223, 5
      %v1226 = vor.u32 %v1222, %v1225
      %v1227 = vrot.slane %v1226, 4
      %v1229 = vshll.u32 %v1204, 16
      %v1231 = vrot.slane %v1229, 5
      %v1232 = vsel %vm498, %v1227, %v1231
      %v1234 = vshrl.u32 %v1205, 16
      %v1236 = vrot.slane %v1234, 4
      %v1237 = vshll.u32 %v1205, 16
      %v1239 = vrot.slane %v1237, 5
      %v1240 = vor.u32 %v1236, %v1239
      %v1241 = vrot.slane %v1240, 4
      %v1243 = vshll.u32 %v1206, 16
      %v1245 = vrot.slane %v1243, 5
      %v1246 = vsel %vm498, %v1241, %v1245
      %v1248 = vshrl.u32 %v1207, 16
      %v1250 = vrot.slane %v1248, 4
      %v1251 = vshll.u32 %v1207, 16
      %v1253 = vrot.slane %v1251, 5
      %v1254 = vor.u32 %v1250, %v1253
      %v1255 = vrot.slane %v1254, 4
      %v1257 = vshll.u32 %v1208, 16
      %v1259 = vrot.slane %v1257, 5
      %v1260 = vsel %vm498, %v1255, %v1259
      %v1262 = vshrl.u32 %v1209, 16
      %v1264 = vrot.slane %v1262, 4
      %v1265 = vshll.u32 %v1209, 16
      %v1267 = vrot.slane %v1265, 5
      %v1268 = vor.u32 %v1264, %v1267
      %v1269 = vrot.slane %v1268, 4
      %v1271 = vshll.u32 %v1210, 16
      %v1273 = vrot.slane %v1271, 5
      %v1274 = vsel %vm498, %v1269, %v1273
      %v1276 = vshrl.u32 %v1211, 16
      %v1278 = vrot.slane %v1276, 4
      %v1279 = vshll.u32 %v1211, 16
      %v1281 = vrot.slane %v1279, 5
      %v1282 = vor.u32 %v1278, %v1281
      %v1283 = vrot.slane %v1282, 4
      %v1285 = vshll.u32 %v1212, 16
      %v1287 = vrot.slane %v1285, 5
      %v1288 = vsel %vm498, %v1283, %v1287
      %v1290 = vshrl.u32 %v1213, 16
      %v1292 = vrot.slane %v1290, 4
      %v1293 = vshll.u32 %v1213, 16
      %v1295 = vrot.slane %v1293, 5
      %v1296 = vor.u32 %v1292, %v1295
      %v1297 = vrot.slane %v1296, 4
      %v1299 = vshll.u32 %v1214, 16
      %v1301 = vrot.slane %v1299, 5
      %v1302 = vsel %vm498, %v1297, %v1301
      %v1304 = vshrl.u32 %v1215, 16
      %v1306 = vrot.slane %v1304, 4
      %v1307 = vshll.u32 %v1215, 16
      %v1309 = vrot.slane %v1307, 5
      %v1310 = vor.u32 %v1306, %v1309
      %v1311 = vrot.slane %v1310, 4
      %v1313 = vshll.u32 %v1216, 16
      %v1315 = vrot.slane %v1313, 5
      %v1316 = vsel %vm498, %v1311, %v1315
      %v1318 = vshrl.u32 %v1217, 16
      %v1320 = vrot.slane %v1318, 4
      %v1321 = vshll.u32 %v1217, 16
      %v1323 = vrot.slane %v1321, 5
      %v1324 = vor.u32 %v1320, %v1323
      %v1325 = vrot.slane %v1324, 4
      %v1327 = vshll.u32 %v1218, 16
      %v1329 = vrot.slane %v1327, 5
      %v1330 = vsel %vm498, %v1325, %v1329
      %s1331 = scalar_lea.vmem %s1, 32
      %v1332 = vld [vmem:[%s1331] sm:$0xf]
      %v1333 = vunpack.c.l.b16 %v1232
      %v1334 = vunpack.c.l.b16 %v1246
      %v1335 = vunpack.c.l.b16 %v1260
      %v1336 = vunpack.c.l.b16 %v1274
      %v1337 = vunpack.c.l.b16 %v1288
      %v1338 = vunpack.c.l.b16 %v1302
      %v1339 = vunpack.c.l.b16 %v1316
      %v1340 = vunpack.c.l.b16 %v1330
      %v1341 = vpack.c.b16 %v1334, %v1333
      %v1342 = vpack.c.b16 %v1336, %v1335
      %v1343 = vpack.c.b16 %v1338, %v1337
      %v1344 = vpack.c.b16 %v1340, %v1339
      %v1346 = vsel %vm370, %v1341, 0
      %v1349 = vsel %vm370, %v1342, 0
      %v1352 = vsel %vm370, %v1343, 0
      %v1355 = vsel %vm370, %v1344, 0
      %v1358 = vsel %vm383, %v1332, 0
      %1360 = vmatpush.bf16.msra.mxu0 0
      %1361 = vmatpush.bf16.msra.mxu0 0
      %1362 = vmatpush.bf16.msra.mxu0 0
      %1363 = vmatpush.bf16.msra.mxu0 0
      %1364 = vmatpush.bf16.msra.mxu0 0
      %1365 = vmatpush.bf16.msra.mxu0 0
      %1366 = vmatpush.bf16.msra.mxu0 0
      %1367 = vmatpush.bf16.msra.mxu0 %v1358
      %1368 = vmatmul.bf16.gmra.mxu0 %v1346
      %v1369 = vpop.f32.mrf.mxu0
      %v1370 = vadd.f32 0.0, %v1369
      %v1371 = vpop.f32.mrf.mxu0
      %v1372 = vadd.f32 0.0, %v1371
      %1373 = vmatmul.bf16.gmra.mxu0 %v1349
      %v1374 = vpop.f32.mrf.mxu0
      %v1375 = vadd.f32 0.0, %v1374
      %v1376 = vpop.f32.mrf.mxu0
      %v1377 = vadd.f32 0.0, %v1376
      %1378 = vmatmul.bf16.gmra.mxu0 %v1352
      %v1379 = vpop.f32.mrf.mxu0
      %v1380 = vadd.f32 0.0, %v1379
      %v1381 = vpop.f32.mrf.mxu0
      %v1382 = vadd.f32 0.0, %v1381
      %1383 = vmatmul.bf16.gmra.mxu0 %v1355
      %v1384 = vpop.f32.mrf.mxu0
      %v1385 = vadd.f32 0.0, %v1384
      %v1386 = vpop.f32.mrf.mxu0
      %v1387 = vadd.f32 0.0, %v1386
      %1388 = vdwg.mxu0
      %v1389 = vadd.f32 %v1195, %v1370
      %v1390 = vadd.f32 %v1196, %v1372
      %v1391 = vadd.f32 %v1197, %v1375
      %v1392 = vadd.f32 %v1198, %v1377
      %v1393 = vadd.f32 %v1199, %v1380
      %v1394 = vadd.f32 %v1200, %v1382
      %v1395 = vadd.f32 %v1201, %v1385
      %v1396 = vadd.f32 %v1202, %v1387
      %v1397 = vld [vmem:[%s2] sm:$0x1]
      %v1399 = vperm.slane %v1397, 0
      %v1401 = vadd.f32 %v1389, %v1399
      %v1402 = vadd.f32 %v1390, %v1399
      %v1403 = vadd.f32 %v1391, %v1399
      %v1404 = vadd.f32 %v1392, %v1399
      %v1405 = vadd.f32 %v1393, %v1399
      %v1406 = vadd.f32 %v1394, %v1399
      %v1407 = vadd.f32 %v1395, %v1399
      %v1408 = vadd.f32 %v1396, %v1399
      %v1409 = vmax.f32 %v1401, 0.0
      %v1410 = vmax.f32 %v1402, 0.0
      %v1411 = vmax.f32 %v1403, 0.0
      %v1412 = vmax.f32 %v1404, 0.0
      %v1413 = vmax.f32 %v1405, 0.0
      %v1414 = vmax.f32 %v1406, 0.0
      %v1415 = vmax.f32 %v1407, 0.0
      %v1416 = vmax.f32 %v1408, 0.0
      %vm1417 = vcmask 125952
      %1418 = vst.msk [vmem:[#allocation2] sm:$0xf] %vm1417, 0
      %vm1419 = vcmask 122880
      %1420 = vst.msk [vmem:[#allocation2 + $0x4] sm:$0x1] %vm1419, 0
      %s1421 = scalar_lea.vmem [#allocation2], 72
      %1422 = vst.msk [vmem:[%s1421] sm:$0xf] %vm1417, 0
      %1423 = vst.msk [vmem:[%s1421 + $0x4] sm:$0x1] %vm1419, 0
      %s1424 = scalar_lea.vmem [#allocation2], 8
      %vm1425 = vcmask 122880
      %vm1426 = vsmask.f32 256
      %vm1427 = vmand %vm1425, %vm1426
      %v1428 = vld [vmem:[%s1424] sm:$0x1]
      %v1429 = vsel %vm1427, 0, %v1428
      %1430 = vst [vmem:[%s1424] sm:$0x1] %v1429
      %v1431 = vld [vmem:[%s1424 + $0x8] sm:$0x1]
      %v1432 = vsel %vm1427, 0, %v1431
      %1433 = vst [vmem:[%s1424 + $0x8] sm:$0x1] %v1432
      %v1434 = vld [vmem:[%s1424 + $0x10] sm:$0x1]
      %v1435 = vsel %vm1427, 0, %v1434
      %1436 = vst [vmem:[%s1424 + $0x10] sm:$0x1] %v1435
      %v1437 = vld [vmem:[%s1424 + $0x18] sm:$0x1]
      %v1438 = vsel %vm1427, 0, %v1437
      %1439 = vst [vmem:[%s1424 + $0x18] sm:$0x1] %v1438
      %v1440 = vld [vmem:[%s1424 + $0x20] sm:$0x1]
      %v1441 = vsel %vm1427, 0, %v1440
      %1442 = vst [vmem:[%s1424 + $0x20] sm:$0x1] %v1441
      %v1443 = vld [vmem:[%s1424 + $0x28] sm:$0x1]
      %v1444 = vsel %vm1427, 0, %v1443
      %1445 = vst [vmem:[%s1424 + $0x28] sm:$0x1] %v1444
      %v1446 = vld [vmem:[%s1424 + $0x30] sm:$0x1]
      %v1447 = vsel %vm1427, 0, %v1446
      %1448 = vst [vmem:[%s1424 + $0x30] sm:$0x1] %v1447
      %v1449 = vld [vmem:[%s1424 + $0x38] sm:$0x1]
      %v1450 = vsel %vm1427, 0, %v1449
      %1451 = vst [vmem:[%s1424 + $0x38] sm:$0x1] %v1450
      %vm1452 = vsmask.f32 7938
      %vm1453 = vmand %vm1425, %vm1452
      %v1454 = vld [vmem:[%s1424 + $0x4] sm:$0x1]
      %v1455 = vsel %vm1453, 0, %v1454
      %1456 = vst [vmem:[%s1424 + $0x4] sm:$0x1] %v1455
      %v1457 = vld [vmem:[%s1424 + $0xc] sm:$0x1]
      %v1458 = vsel %vm1453, 0, %v1457
      %1459 = vst [vmem:[%s1424 + $0xc] sm:$0x1] %v1458
      %v1460 = vld [vmem:[%s1424 + $0x14] sm:$0x1]
      %v1461 = vsel %vm1453, 0, %v1460
      %1462 = vst [vmem:[%s1424 + $0x14] sm:$0x1] %v1461
      %v1463 = vld [vmem:[%s1424 + $0x1c] sm:$0x1]
      %v1464 = vsel %vm1453, 0, %v1463
      %1465 = vst [vmem:[%s1424 + $0x1c] sm:$0x1] %v1464
      %v1466 = vld [vmem:[%s1424 + $0x24] sm:$0x1]
      %v1467 = vsel %vm1453, 0, %v1466
      %1468 = vst [vmem:[%s1424 + $0x24] sm:$0x1] %v1467
      %v1469 = vld [vmem:[%s1424 + $0x2c] sm:$0x1]
      %v1470 = vsel %vm1453, 0, %v1469
      %1471 = vst [vmem:[%s1424 + $0x2c] sm:$0x1] %v1470
      %v1472 = vld [vmem:[%s1424 + $0x34] sm:$0x1]
      %v1473 = vsel %vm1453, 0, %v1472
      %1474 = vst [vmem:[%s1424 + $0x34] sm:$0x1] %v1473
      %v1475 = vld [vmem:[%s1424 + $0x3c] sm:$0x1]
      %v1476 = vsel %vm1453, 0, %v1475
      %1477 = vst [vmem:[%s1424 + $0x3c] sm:$0x1] %v1476
      %v1478 = vpack.c.bf16 %v1409, %v1409
      %v1479 = vpack.c.bf16 %v1410, %v1410
      %v1480 = vpack.c.bf16 %v1411, %v1411
      %v1481 = vpack.c.bf16 %v1412, %v1412
      %v1482 = vpack.c.bf16 %v1413, %v1413
      %v1483 = vpack.c.bf16 %v1414, %v1414
      %v1484 = vpack.c.bf16 %v1415, %v1415
      %v1485 = vpack.c.bf16 %v1416, %v1416
      %v1487 = vshrl.u32 %v1478, 16
      %v1489 = vrot.slane %v1487, 7
      %v1490 = vshll.u32 %v1478, 16
      %v1492 = vor.u32 %v1489, %v1490
      %v1493 = vrot.slane %v1489, 4
      %v1495 = vshrl.u32 %v1479, 16
      %v1497 = vrot.slane %v1495, 7
      %v1498 = vshll.u32 %v1479, 16
      %v1500 = vor.u32 %v1497, %v1498
      %v1501 = vrot.slane %v1497, 4
      %v1503 = vshrl.u32 %v1480, 16
      %v1505 = vrot.slane %v1503, 7
      %v1506 = vshll.u32 %v1480, 16
      %v1508 = vor.u32 %v1505, %v1506
      %v1509 = vrot.slane %v1505, 4
      %v1511 = vshrl.u32 %v1481, 16
      %v1513 = vrot.slane %v1511, 7
      %v1514 = vshll.u32 %v1481, 16
      %v1516 = vor.u32 %v1513, %v1514
      %v1517 = vrot.slane %v1513, 4
      %v1519 = vshrl.u32 %v1482, 16
      %v1521 = vrot.slane %v1519, 7
      %v1522 = vshll.u32 %v1482, 16
      %v1524 = vor.u32 %v1521, %v1522
      %v1525 = vrot.slane %v1521, 4
      %v1527 = vshrl.u32 %v1483, 16
      %v1529 = vrot.slane %v1527, 7
      %v1530 = vshll.u32 %v1483, 16
      %v1532 = vor.u32 %v1529, %v1530
      %v1533 = vrot.slane %v1529, 4
      %v1535 = vshrl.u32 %v1484, 16
      %v1537 = vrot.slane %v1535, 7
      %v1538 = vshll.u32 %v1484, 16
      %v1540 = vor.u32 %v1537, %v1538
      %v1541 = vrot.slane %v1537, 4
      %v1543 = vshrl.u32 %v1485, 16
      %v1545 = vrot.slane %v1543, 7
      %v1546 = vshll.u32 %v1485, 16
      %v1548 = vor.u32 %v1545, %v1546
      %v1549 = vrot.slane %v1545, 4
      %vm1566 = vcmask 125952
      %vm1567 = vmand %vm1566, %vm1452
      %v1568 = vld [vmem:[%s1424] sm:$0xf]
      %v1569 = vsel %vm1567, %v1492, %v1568
      %1570 = vst [vmem:[%s1424] sm:$0xf] %v1569
      %v1571 = vld [vmem:[%s1424 + $0x4] sm:$0x1]
      %v1572 = vsel %vm1427, %v1493, %v1571
      %1573 = vst [vmem:[%s1424 + $0x4] sm:$0x1] %v1572
      %v1574 = vld [vmem:[%s1424 + $0x8] sm:$0xf]
      %v1575 = vsel %vm1567, %v1500, %v1574
      %1576 = vst [vmem:[%s1424 + $0x8] sm:$0xf] %v1575
      %v1577 = vld [vmem:[%s1424 + $0xc] sm:$0x1]
      %v1578 = vsel %vm1427, %v1501, %v1577
      %1579 = vst [vmem:[%s1424 + $0xc] sm:$0x1] %v1578
      %v1580 = vld [vmem:[%s1424 + $0x10] sm:$0xf]
      %v1581 = vsel %vm1567, %v1508, %v1580
      %1582 = vst [vmem:[%s1424 + $0x10] sm:$0xf] %v1581
      %v1583 = vld [vmem:[%s1424 + $0x14] sm:$0x1]
      %v1584 = vsel %vm1427, %v1509, %v1583
      %1585 = vst [vmem:[%s1424 + $0x14] sm:$0x1] %v1584
      %v1586 = vld [vmem:[%s1424 + $0x18] sm:$0xf]
      %v1587 = vsel %vm1567, %v1516, %v1586
      %1588 = vst [vmem:[%s1424 + $0x18] sm:$0xf] %v1587
      %v1589 = vld [vmem:[%s1424 + $0x1c] sm:$0x1]
      %v1590 = vsel %vm1427, %v1517, %v1589
      %1591 = vst [vmem:[%s1424 + $0x1c] sm:$0x1] %v1590
      %v1592 = vld [vmem:[%s1424 + $0x20] sm:$0xf]
      %v1593 = vsel %vm1567, %v1524, %v1592
      %1594 = vst [vmem:[%s1424 + $0x20] sm:$0xf] %v1593
      %v1595 = vld [vmem:[%s1424 + $0x24] sm:$0x1]
      %v1596 = vsel %vm1427, %v1525, %v1595
      %1597 = vst [vmem:[%s1424 + $0x24] sm:$0x1] %v1596
      %v1598 = vld [vmem:[%s1424 + $0x28] sm:$0xf]
      %v1599 = vsel %vm1567, %v1532, %v1598
      %1600 = vst [vmem:[%s1424 + $0x28] sm:$0xf] %v1599
      %v1601 = vld [vmem:[%s1424 + $0x2c] sm:$0x1]
      %v1602 = vsel %vm1427, %v1533, %v1601
      %1603 = vst [vmem:[%s1424 + $0x2c] sm:$0x1] %v1602
      %v1604 = vld [vmem:[%s1424 + $0x30] sm:$0xf]
      %v1605 = vsel %vm1567, %v1540, %v1604
      %1606 = vst [vmem:[%s1424 + $0x30] sm:$0xf] %v1605
      %v1607 = vld [vmem:[%s1424 + $0x34] sm:$0x1]
      %v1608 = vsel %vm1427, %v1541, %v1607
      %1609 = vst [vmem:[%s1424 + $0x34] sm:$0x1] %v1608
      %v1610 = vld [vmem:[%s1424 + $0x38] sm:$0xf]
      %v1611 = vsel %vm1567, %v1548, %v1610
      %1612 = vst [vmem:[%s1424 + $0x38] sm:$0xf] %v1611
      %v1613 = vld [vmem:[%s1424 + $0x3c] sm:$0x1]
      %v1614 = vsel %vm1427, %v1549, %v1613
      %1615 = vst [vmem:[%s1424 + $0x3c] sm:$0x1] %v1614
      %v1616 = vld [vmem:[#allocation2] sm:$0xf]
      %v1617 = vld [vmem:[#allocation2 + $0x8] sm:$0xf]
      %v1618 = vld [vmem:[#allocation2 + $0x10] sm:$0xf]
      %v1619 = vld [vmem:[#allocation2 + $0x18] sm:$0xf]
      %v1620 = vld [vmem:[#allocation2 + $0x20] sm:$0xf]
      %v1621 = vld [vmem:[#allocation2 + $0x28] sm:$0xf]
      %v1622 = vld [vmem:[#allocation2 + $0x30] sm:$0xf]
      %v1623 = vld [vmem:[#allocation2 + $0x38] sm:$0xf]
      %v1624 = vld [vmem:[%s3] sm:$0xf]
      %v1625 = vld [vmem:[%s3 + $0x4] sm:$0xf]
      %v1626 = vld [vmem:[#allocation2 + $0x4] sm:$0x1]
      %v1627 = vld [vmem:[#allocation2 + $0xc] sm:$0x1]
      %v1628 = vld [vmem:[#allocation2 + $0x14] sm:$0x1]
      %v1629 = vld [vmem:[#allocation2 + $0x1c] sm:$0x1]
      %v1630 = vld [vmem:[#allocation2 + $0x24] sm:$0x1]
      %v1631 = vld [vmem:[#allocation2 + $0x2c] sm:$0x1]
      %v1632 = vld [vmem:[#allocation2 + $0x34] sm:$0x1]
      %v1633 = vld [vmem:[#allocation2 + $0x3c] sm:$0x1]
      %v1635 = vshrl.u32 %v1616, 16
      %v1637 = vrot.slane %v1635, 4
      %v1638 = vshll.u32 %v1616, 16
      %v1640 = vrot.slane %v1638, 5
      %v1641 = vor.u32 %v1637, %v1640
      %v1642 = vrot.slane %v1641, 4
      %v1644 = vshll.u32 %v1626, 16
      %v1646 = vrot.slane %v1644, 5
      %v1647 = vsel %vm498, %v1642, %v1646
      %v1649 = vshrl.u32 %v1617, 16
      %v1651 = vrot.slane %v1649, 4
      %v1652 = vshll.u32 %v1617, 16
      %v1654 = vrot.slane %v1652, 5
      %v1655 = vor.u32 %v1651, %v1654
      %v1656 = vrot.slane %v1655, 4
      %v1658 = vshll.u32 %v1627, 16
      %v1660 = vrot.slane %v1658, 5
      %v1661 = vsel %vm498, %v1656, %v1660
      %v1663 = vshrl.u32 %v1618, 16
      %v1665 = vrot.slane %v1663, 4
      %v1666 = vshll.u32 %v1618, 16
      %v1668 = vrot.slane %v1666, 5
      %v1669 = vor.u32 %v1665, %v1668
      %v1670 = vrot.slane %v1669, 4
      %v1672 = vshll.u32 %v1628, 16
      %v1674 = vrot.slane %v1672, 5
      %v1675 = vsel %vm498, %v1670, %v1674
      %v1677 = vshrl.u32 %v1619, 16
      %v1679 = vrot.slane %v1677, 4
      %v1680 = vshll.u32 %v1619, 16
      %v1682 = vrot.slane %v1680, 5
      %v1683 = vor.u32 %v1679, %v1682
      %v1684 = vrot.slane %v1683, 4
      %v1686 = vshll.u32 %v1629, 16
      %v1688 = vrot.slane %v1686, 5
      %v1689 = vsel %vm498, %v1684, %v1688
      %v1691 = vshrl.u32 %v1620, 16
      %v1693 = vrot.slane %v1691, 4
      %v1694 = vshll.u32 %v1620, 16
      %v1696 = vrot.slane %v1694, 5
      %v1697 = vor.u32 %v1693, %v1696
      %v1698 = vrot.slane %v1697, 4
      %v1700 = vshll.u32 %v1630, 16
      %v1702 = vrot.slane %v1700, 5
      %v1703 = vsel %vm498, %v1698, %v1702
      %v1705 = vshrl.u32 %v1621, 16
      %v1707 = vrot.slane %v1705, 4
      %v1708 = vshll.u32 %v1621, 16
      %v1710 = vrot.slane %v1708, 5
      %v1711 = vor.u32 %v1707, %v1710
      %v1712 = vrot.slane %v1711, 4
      %v1714 = vshll.u32 %v1631, 16
      %v1716 = vrot.slane %v1714, 5
      %v1717 = vsel %vm498, %v1712, %v1716
      %v1719 = vshrl.u32 %v1622, 16
      %v1721 = vrot.slane %v1719, 4
      %v1722 = vshll.u32 %v1622, 16
      %v1724 = vrot.slane %v1722, 5
      %v1725 = vor.u32 %v1721, %v1724
      %v1726 = vrot.slane %v1725, 4
      %v1728 = vshll.u32 %v1632, 16
      %v1730 = vrot.slane %v1728, 5
      %v1731 = vsel %vm498, %v1726, %v1730
      %v1733 = vshrl.u32 %v1623, 16
      %v1735 = vrot.slane %v1733, 4
      %v1736 = vshll.u32 %v1623, 16
      %v1738 = vrot.slane %v1736, 5
      %v1739 = vor.u32 %v1735, %v1738
      %v1740 = vrot.slane %v1739, 4
      %v1742 = vshll.u32 %v1633, 16
      %v1744 = vrot.slane %v1742, 5
      %v1745 = vsel %vm498, %v1740, %v1744
      %s1746 = scalar_lea.vmem %s3, 8
      %v1747 = vld [vmem:[%s1746] sm:$0xf]
      %v1748 = vld [vmem:[%s1746 + $0x4] sm:$0xf]
      %v1749 = vunpack.c.l.b16 %v1647
      %v1750 = vunpack.c.l.b16 %v1661
      %v1751 = vunpack.c.l.b16 %v1675
      %v1752 = vunpack.c.l.b16 %v1689
      %v1753 = vunpack.c.l.b16 %v1703
      %v1754 = vunpack.c.l.b16 %v1717
      %v1755 = vunpack.c.l.b16 %v1731
      %v1756 = vunpack.c.l.b16 %v1745
      %v1757 = vpack.c.b16 %v1750, %v1749
      %v1758 = vpack.c.b16 %v1752, %v1751
      %v1759 = vpack.c.b16 %v1754, %v1753
      %v1760 = vpack.c.b16 %v1756, %v1755
      %v1763 = vunpack.c.l.b16 %v1747
      %v1764 = vunpack.c.l.b16 %v1748
      %v1765 = vpack.c.b16 %v1764, %v1763
      %vm1767 = vcmask 130048
      %v1769 = vsel %vm1767, %v1757, 0
      %v1772 = vsel %vm1767, %v1758, 0
      %v1775 = vsel %vm1767, %v1759, 0
      %v1778 = vsel %vm1767, %v1760, 0
      %1780 = vmatpush.bf16.msra.mxu0 0
      %1781 = vmatpush.bf16.msra.mxu0 0
      %1782 = vmatpush.bf16.msra.mxu0 0
      %1783 = vmatpush.bf16.msra.mxu0 0
      %1784 = vmatpush.bf16.msra.mxu0 0
      %1785 = vmatpush.bf16.msra.mxu0 0
      %1786 = vmatpush.bf16.msra.mxu0 0
      %1787 = vmatpush.bf16.msra.mxu0 %v1765
      %1788 = vmatmul.bf16.gmra.mxu0 %v1769
      %v1789 = vpop.f32.mrf.mxu0
      %v1790 = vadd.f32 0.0, %v1789
      %v1791 = vpop.f32.mrf.mxu0
      %v1792 = vadd.f32 0.0, %v1791
      %1793 = vmatmul.bf16.gmra.mxu0 %v1772
      %v1794 = vpop.f32.mrf.mxu0
      %v1795 = vadd.f32 0.0, %v1794
      %v1796 = vpop.f32.mrf.mxu0
      %v1797 = vadd.f32 0.0, %v1796
      %1798 = vmatmul.bf16.gmra.mxu0 %v1775
      %v1799 = vpop.f32.mrf.mxu0
      %v1800 = vadd.f32 0.0, %v1799
      %v1801 = vpop.f32.mrf.mxu0
      %v1802 = vadd.f32 0.0, %v1801
      %1803 = vmatmul.bf16.gmra.mxu0 %v1778
      %v1804 = vpop.f32.mrf.mxu0
      %v1805 = vadd.f32 0.0, %v1804
      %v1806 = vpop.f32.mrf.mxu0
      %v1807 = vadd.f32 0.0, %v1806
      %1808 = vdwg.mxu0
      %v1817 = vunpack.c.l.b16 %v1616
      %v1818 = vunpack.c.l.b16 %v1617
      %v1819 = vunpack.c.l.b16 %v1618
      %v1820 = vunpack.c.l.b16 %v1619
      %v1821 = vunpack.c.l.b16 %v1620
      %v1822 = vunpack.c.l.b16 %v1621
      %v1823 = vunpack.c.l.b16 %v1622
      %v1824 = vunpack.c.l.b16 %v1623
      %v1825 = vpack.c.b16 %v1818, %v1817
      %v1826 = vpack.c.b16 %v1820, %v1819
      %v1827 = vpack.c.b16 %v1822, %v1821
      %v1828 = vpack.c.b16 %v1824, %v1823
      %v1831 = vunpack.c.l.b16 %v1624
      %v1832 = vunpack.c.l.b16 %v1625
      %v1833 = vpack.c.b16 %v1832, %v1831
      %v1836 = vsel %vm1767, %v1825, 0
      %v1839 = vsel %vm1767, %v1826, 0
      %v1842 = vsel %vm1767, %v1827, 0
      %v1845 = vsel %vm1767, %v1828, 0
      %1847 = vmatpush.bf16.msra.mxu0 0
      %1848 = vmatpush.bf16.msra.mxu0 0
      %1849 = vmatpush.bf16.msra.mxu0 0
      %1850 = vmatpush.bf16.msra.mxu0 0
      %1851 = vmatpush.bf16.msra.mxu0 0
      %1852 = vmatpush.bf16.msra.mxu0 0
      %1853 = vmatpush.bf16.msra.mxu0 0
      %1854 = vmatpush.bf16.msra.mxu0 %v1833
      %1855 = vmatmul.bf16.gmra.mxu0 %v1836
      %v1856 = vpop.f32.mrf.mxu0
      %v1857 = vadd.f32 %v1790, %v1856
      %v1858 = vpop.f32.mrf.mxu0
      %v1859 = vadd.f32 %v1792, %v1858
      %1860 = vmatmul.bf16.gmra.mxu0 %v1839
      %v1861 = vpop.f32.mrf.mxu0
      %v1862 = vadd.f32 %v1795, %v1861
      %v1863 = vpop.f32.mrf.mxu0
      %v1864 = vadd.f32 %v1797, %v1863
      %1865 = vmatmul.bf16.gmra.mxu0 %v1842
      %v1866 = vpop.f32.mrf.mxu0
      %v1867 = vadd.f32 %v1800, %v1866
      %v1868 = vpop.f32.mrf.mxu0
      %v1869 = vadd.f32 %v1802, %v1868
      %1870 = vmatmul.bf16.gmra.mxu0 %v1845
      %v1871 = vpop.f32.mrf.mxu0
      %v1872 = vadd.f32 %v1805, %v1871
      %v1873 = vpop.f32.mrf.mxu0
      %v1874 = vadd.f32 %v1807, %v1873
      %1875 = vdwg.mxu0
      %v1876 = vld [vmem:[#allocation2] sm:$0xe]
      %v1877 = vld [vmem:[#allocation2 + $0x8] sm:$0xe]
      %v1878 = vld [vmem:[#allocation2 + $0x10] sm:$0xe]
      %v1879 = vld [vmem:[#allocation2 + $0x18] sm:$0xe]
      %v1880 = vld [vmem:[#allocation2 + $0x20] sm:$0xe]
      %v1881 = vld [vmem:[#allocation2 + $0x28] sm:$0xe]
      %v1882 = vld [vmem:[#allocation2 + $0x30] sm:$0xe]
      %v1883 = vld [vmem:[#allocation2 + $0x38] sm:$0xe]
      %vm1900 = vcmask 1042432
      %vm1901 = vcmask 1046532
      %vm1902 = vmor %vm1900, %vm1901
      %v1903 = vrot.slane %v1876, 5
      %v1904 = vrot.slane %v1903, 4
      %v1905 = vrot.slane %v1626, 5
      %v1906 = vsel %vm1902, %v1904, %v1905
      %v1907 = vrot.slane %v1877, 5
      %v1908 = vrot.slane %v1907, 4
      %v1909 = vrot.slane %v1627, 5
      %v1910 = vsel %vm1902, %v1908, %v1909
      %v1911 = vrot.slane %v1878, 5
      %v1912 = vrot.slane %v1911, 4
      %v1913 = vrot.slane %v1628, 5
      %v1914 = vsel %vm1902, %v1912, %v1913
      %v1915 = vrot.slane %v1879, 5
      %v1916 = vrot.slane %v1915, 4
      %v1917 = vrot.slane %v1629, 5
      %v1918 = vsel %vm1902, %v1916, %v1917
      %v1919 = vrot.slane %v1880, 5
      %v1920 = vrot.slane %v1919, 4
      %v1921 = vrot.slane %v1630, 5
      %v1922 = vsel %vm1902, %v1920, %v1921
      %v1923 = vrot.slane %v1881, 5
      %v1924 = vrot.slane %v1923, 4
      %v1925 = vrot.slane %v1631, 5
      %v1926 = vsel %vm1902, %v1924, %v1925
      %v1927 = vrot.slane %v1882, 5
      %v1928 = vrot.slane %v1927, 4
      %v1929 = vrot.slane %v1632, 5
      %v1930 = vsel %vm1902, %v1928, %v1929
      %v1931 = vrot.slane %v1883, 5
      %v1932 = vrot.slane %v1931, 4
      %v1933 = vrot.slane %v1633, 5
      %v1934 = vsel %vm1902, %v1932, %v1933
      %s1935 = scalar_lea.vmem %s3, 16
      %v1936 = vld [vmem:[%s1935] sm:$0xf]
      %v1937 = vld [vmem:[%s1935 + $0x4] sm:$0xf]
      %v1938 = vunpack.c.l.b16 %v1906
      %v1939 = vunpack.c.l.b16 %v1910
      %v1940 = vunpack.c.l.b16 %v1914
      %v1941 = vunpack.c.l.b16 %v1918
      %v1942 = vunpack.c.l.b16 %v1922
      %v1943 = vunpack.c.l.b16 %v1926
      %v1944 = vunpack.c.l.b16 %v1930
      %v1945 = vunpack.c.l.b16 %v1934
      %v1946 = vpack.c.b16 %v1939, %v1938
      %v1947 = vpack.c.b16 %v1941, %v1940
      %v1948 = vpack.c.b16 %v1943, %v1942
      %v1949 = vpack.c.b16 %v1945, %v1944
      %v1952 = vunpack.c.l.b16 %v1936
      %v1953 = vunpack.c.l.b16 %v1937
      %v1954 = vpack.c.b16 %v1953, %v1952
      %v1957 = vsel %vm1767, %v1946, 0
      %v1960 = vsel %vm1767, %v1947, 0
      %v1963 = vsel %vm1767, %v1948, 0
      %v1966 = vsel %vm1767, %v1949, 0
      %1968 = vmatpush.bf16.msra.mxu0 0
      %1969 = vmatpush.bf16.msra.mxu0 0
      %1970 = vmatpush.bf16.msra.mxu0 0
      %1971 = vmatpush.bf16.msra.mxu0 0
      %1972 = vmatpush.bf16.msra.mxu0 0
      %1973 = vmatpush.bf16.msra.mxu0 0
      %1974 = vmatpush.bf16.msra.mxu0 0
      %1975 = vmatpush.bf16.msra.mxu0 %v1954
      %1976 = vmatmul.bf16.gmra.mxu0 %v1957
      %v1977 = vpop.f32.mrf.mxu0
      %v1978 = vadd.f32 0.0, %v1977
      %v1979 = vpop.f32.mrf.mxu0
      %v1980 = vadd.f32 0.0, %v1979
      %1981 = vmatmul.bf16.gmra.mxu0 %v1960
      %v1982 = vpop.f32.mrf.mxu0
      %v1983 = vadd.f32 0.0, %v1982
      %v1984 = vpop.f32.mrf.mxu0
      %v1985 = vadd.f32 0.0, %v1984
      %1986 = vmatmul.bf16.gmra.mxu0 %v1963
      %v1987 = vpop.f32.mrf.mxu0
      %v1988 = vadd.f32 0.0, %v1987
      %v1989 = vpop.f32.mrf.mxu0
      %v1990 = vadd.f32 0.0, %v1989
      %1991 = vmatmul.bf16.gmra.mxu0 %v1966
      %v1992 = vpop.f32.mrf.mxu0
      %v1993 = vadd.f32 0.0, %v1992
      %v1994 = vpop.f32.mrf.mxu0
      %v1995 = vadd.f32 0.0, %v1994
      %1996 = vdwg.mxu0
      %v1997 = vadd.f32 %v1857, %v1978
      %v1998 = vadd.f32 %v1859, %v1980
      %v1999 = vadd.f32 %v1862, %v1983
      %v2000 = vadd.f32 %v1864, %v1985
      %v2001 = vadd.f32 %v1867, %v1988
      %v2002 = vadd.f32 %v1869, %v1990
      %v2003 = vadd.f32 %v1872, %v1993
      %v2004 = vadd.f32 %v1874, %v1995
      %v2005 = vld [vmem:[%s1424] sm:$0xf]
      %v2006 = vld [vmem:[%s1424 + $0x8] sm:$0xf]
      %v2007 = vld [vmem:[%s1424 + $0x10] sm:$0xf]
      %v2008 = vld [vmem:[%s1424 + $0x18] sm:$0xf]
      %v2009 = vld [vmem:[%s1424 + $0x20] sm:$0xf]
      %v2010 = vld [vmem:[%s1424 + $0x28] sm:$0xf]
      %v2011 = vld [vmem:[%s1424 + $0x30] sm:$0xf]
      %v2012 = vld [vmem:[%s1424 + $0x38] sm:$0xf]
      %s2013 = scalar_lea.vmem %s3, 24
      %v2014 = vld [vmem:[%s2013] sm:$0xf]
      %v2015 = vld [vmem:[%s2013 + $0x4] sm:$0xf]
      %v2024 = vunpack.c.l.b16 %v2005
      %v2025 = vunpack.c.l.b16 %v2006
      %v2026 = vunpack.c.l.b16 %v2007
      %v2027 = vunpack.c.l.b16 %v2008
      %v2028 = vunpack.c.l.b16 %v2009
      %v2029 = vunpack.c.l.b16 %v2010
      %v2030 = vunpack.c.l.b16 %v2011
      %v2031 = vunpack.c.l.b16 %v2012
      %v2032 = vpack.c.b16 %v2025, %v2024
      %v2033 = vpack.c.b16 %v2027, %v2026
      %v2034 = vpack.c.b16 %v2029, %v2028
      %v2035 = vpack.c.b16 %v2031, %v2030
      %v2038 = vunpack.c.l.b16 %v2014
      %v2039 = vunpack.c.l.b16 %v2015
      %v2040 = vpack.c.b16 %v2039, %v2038
      %v2043 = vsel %vm1767, %v2032, 0
      %v2046 = vsel %vm1767, %v2033, 0
      %v2049 = vsel %vm1767, %v2034, 0
      %v2052 = vsel %vm1767, %v2035, 0
      %2054 = vmatpush.bf16.msra.mxu0 0
      %2055 = vmatpush.bf16.msra.mxu0 0
      %2056 = vmatpush.bf16.msra.mxu0 0
      %2057 = vmatpush.bf16.msra.mxu0 0
      %2058 = vmatpush.bf16.msra.mxu0 0
      %2059 = vmatpush.bf16.msra.mxu0 0
      %2060 = vmatpush.bf16.msra.mxu0 0
      %2061 = vmatpush.bf16.msra.mxu0 %v2040
      %2062 = vmatmul.bf16.gmra.mxu0 %v2043
      %v2063 = vpop.f32.mrf.mxu0
      %v2064 = vadd.f32 0.0, %v2063
      %v2065 = vpop.f32.mrf.mxu0
      %v2066 = vadd.f32 0.0, %v2065
      %2067 = vmatmul.bf16.gmra.mxu0 %v2046
      %v2068 = vpop.f32.mrf.mxu0
      %v2069 = vadd.f32 0.0, %v2068
      %v2070 = vpop.f32.mrf.mxu0
      %v2071 = vadd.f32 0.0, %v2070
      %2072 = vmatmul.bf16.gmra.mxu0 %v2049
      %v2073 = vpop.f32.mrf.mxu0
      %v2074 = vadd.f32 0.0, %v2073
      %v2075 = vpop.f32.mrf.mxu0
      %v2076 = vadd.f32 0.0, %v2075
      %2077 = vmatmul.bf16.gmra.mxu0 %v2052
      %v2078 = vpop.f32.mrf.mxu0
      %v2079 = vadd.f32 0.0, %v2078
      %v2080 = vpop.f32.mrf.mxu0
      %v2081 = vadd.f32 0.0, %v2080
      %2082 = vdwg.mxu0
      %v2083 = vadd.f32 %v1997, %v2064
      %v2084 = vadd.f32 %v1998, %v2066
      %v2085 = vadd.f32 %v1999, %v2069
      %v2086 = vadd.f32 %v2000, %v2071
      %v2087 = vadd.f32 %v2001, %v2074
      %v2088 = vadd.f32 %v2002, %v2076
      %v2089 = vadd.f32 %v2003, %v2079
      %v2090 = vadd.f32 %v2004, %v2081
      %v2091 = vld [vmem:[%s1424] sm:$0xf]
      %v2092 = vld [vmem:[%s1424 + $0x4] sm:$0x1]
      %v2093 = vld [vmem:[%s1424 + $0x8] sm:$0xf]
      %v2094 = vld [vmem:[%s1424 + $0xc] sm:$0x1]
      %v2095 = vld [vmem:[%s1424 + $0x10] sm:$0xf]
      %v2096 = vld [vmem:[%s1424 + $0x14] sm:$0x1]
      %v2097 = vld [vmem:[%s1424 + $0x18] sm:$0xf]
      %v2098 = vld [vmem:[%s1424 + $0x1c] sm:$0x1]
      %v2099 = vld [vmem:[%s1424 + $0x20] sm:$0xf]
      %v2100 = vld [vmem:[%s1424 + $0x24] sm:$0x1]
      %v2101 = vld [vmem:[%s1424 + $0x28] sm:$0xf]
      %v2102 = vld [vmem:[%s1424 + $0x2c] sm:$0x1]
      %v2103 = vld [vmem:[%s1424 + $0x30] sm:$0xf]
      %v2104 = vld [vmem:[%s1424 + $0x34] sm:$0x1]
      %v2105 = vld [vmem:[%s1424 + $0x38] sm:$0xf]
      %v2106 = vld [vmem:[%s1424 + $0x3c] sm:$0x1]
      %v2108 = vshrl.u32 %v2091, 16
      %v2110 = vrot.slane %v2108, 4
      %v2111 = vshll.u32 %v2091, 16
      %v2113 = vrot.slane %v2111, 5
      %v2114 = vor.u32 %v2110, %v2113
      %v2115 = vrot.slane %v2114, 4
      %v2117 = vshll.u32 %v2092, 16
      %v2119 = vrot.slane %v2117, 5
      %v2120 = vsel %vm498, %v2115, %v2119
      %v2122 = vshrl.u32 %v2093, 16
      %v2124 = vrot.slane %v2122, 4
      %v2125 = vshll.u32 %v2093, 16
      %v2127 = vrot.slane %v2125, 5
      %v2128 = vor.u32 %v2124, %v2127
      %v2129 = vrot.slane %v2128, 4
      %v2131 = vshll.u32 %v2094, 16
      %v2133 = vrot.slane %v2131, 5
      %v2134 = vsel %vm498, %v2129, %v2133
      %v2136 = vshrl.u32 %v2095, 16
      %v2138 = vrot.slane %v2136, 4
      %v2139 = vshll.u32 %v2095, 16
      %v2141 = vrot.slane %v2139, 5
      %v2142 = vor.u32 %v2138, %v2141
      %v2143 = vrot.slane %v2142, 4
      %v2145 = vshll.u32 %v2096, 16
      %v2147 = vrot.slane %v2145, 5
      %v2148 = vsel %vm498, %v2143, %v2147
      %v2150 = vshrl.u32 %v2097, 16
      %v2152 = vrot.slane %v2150, 4
      %v2153 = vshll.u32 %v2097, 16
      %v2155 = vrot.slane %v2153, 5
      %v2156 = vor.u32 %v2152, %v2155
      %v2157 = vrot.slane %v2156, 4
      %v2159 = vshll.u32 %v2098, 16
      %v2161 = vrot.slane %v2159, 5
      %v2162 = vsel %vm498, %v2157, %v2161
      %v2164 = vshrl.u32 %v2099, 16
      %v2166 = vrot.slane %v2164, 4
      %v2167 = vshll.u32 %v2099, 16
      %v2169 = vrot.slane %v2167, 5
      %v2170 = vor.u32 %v2166, %v2169
      %v2171 = vrot.slane %v2170, 4
      %v2173 = vshll.u32 %v2100, 16
      %v2175 = vrot.slane %v2173, 5
      %v2176 = vsel %vm498, %v2171, %v2175
      %v2178 = vshrl.u32 %v2101, 16
      %v2180 = vrot.slane %v2178, 4
      %v2181 = vshll.u32 %v2101, 16
      %v2183 = vrot.slane %v2181, 5
      %v2184 = vor.u32 %v2180, %v2183
      %v2185 = vrot.slane %v2184, 4
      %v2187 = vshll.u32 %v2102, 16
      %v2189 = vrot.slane %v2187, 5
      %v2190 = vsel %vm498, %v2185, %v2189
      %v2192 = vshrl.u32 %v2103, 16
      %v2194 = vrot.slane %v2192, 4
      %v2195 = vshll.u32 %v2103, 16
      %v2197 = vrot.slane %v2195, 5
      %v2198 = vor.u32 %v2194, %v2197
      %v2199 = vrot.slane %v2198, 4
      %v2201 = vshll.u32 %v2104, 16
      %v2203 = vrot.slane %v2201, 5
      %v2204 = vsel %vm498, %v2199, %v2203
      %v2206 = vshrl.u32 %v2105, 16
      %v2208 = vrot.slane %v2206, 4
      %v2209 = vshll.u32 %v2105, 16
      %v2211 = vrot.slane %v2209, 5
      %v2212 = vor.u32 %v2208, %v2211
      %v2213 = vrot.slane %v2212, 4
      %v2215 = vshll.u32 %v2106, 16
      %v2217 = vrot.slane %v2215, 5
      %v2218 = vsel %vm498, %v2213, %v2217
      %s2219 = scalar_lea.vmem %s3, 32
      %v2220 = vld [vmem:[%s2219] sm:$0xf]
      %v2221 = vld [vmem:[%s2219 + $0x4] sm:$0xf]
      %v2222 = vunpack.c.l.b16 %v2120
      %v2223 = vunpack.c.l.b16 %v2134
      %v2224 = vunpack.c.l.b16 %v2148
      %v2225 = vunpack.c.l.b16 %v2162
      %v2226 = vunpack.c.l.b16 %v2176
      %v2227 = vunpack.c.l.b16 %v2190
      %v2228 = vunpack.c.l.b16 %v2204
      %v2229 = vunpack.c.l.b16 %v2218
      %v2230 = vpack.c.b16 %v2223, %v2222
      %v2231 = vpack.c.b16 %v2225, %v2224
      %v2232 = vpack.c.b16 %v2227, %v2226
      %v2233 = vpack.c.b16 %v2229, %v2228
      %v2236 = vunpack.c.l.b16 %v2220
      %v2237 = vunpack.c.l.b16 %v2221
      %v2238 = vpack.c.b16 %v2237, %v2236
      %v2241 = vsel %vm1767, %v2230, 0
      %v2244 = vsel %vm1767, %v2231, 0
      %v2247 = vsel %vm1767, %v2232, 0
      %v2250 = vsel %vm1767, %v2233, 0
      %2252 = vmatpush.bf16.msra.mxu0 0
      %2253 = vmatpush.bf16.msra.mxu0 0
      %2254 = vmatpush.bf16.msra.mxu0 0
      %2255 = vmatpush.bf16.msra.mxu0 0
      %2256 = vmatpush.bf16.msra.mxu0 0
      %2257 = vmatpush.bf16.msra.mxu0 0
      %2258 = vmatpush.bf16.msra.mxu0 0
      %2259 = vmatpush.bf16.msra.mxu0 %v2238
      %2260 = vmatmul.bf16.gmra.mxu0 %v2241
      %v2261 = vpop.f32.mrf.mxu0
      %v2262 = vadd.f32 0.0, %v2261
      %v2263 = vpop.f32.mrf.mxu0
      %v2264 = vadd.f32 0.0, %v2263
      %2265 = vmatmul.bf16.gmra.mxu0 %v2244
      %v2266 = vpop.f32.mrf.mxu0
      %v2267 = vadd.f32 0.0, %v2266
      %v2268 = vpop.f32.mrf.mxu0
      %v2269 = vadd.f32 0.0, %v2268
      %2270 = vmatmul.bf16.gmra.mxu0 %v2247
      %v2271 = vpop.f32.mrf.mxu0
      %v2272 = vadd.f32 0.0, %v2271
      %v2273 = vpop.f32.mrf.mxu0
      %v2274 = vadd.f32 0.0, %v2273
      %2275 = vmatmul.bf16.gmra.mxu0 %v2250
      %v2276 = vpop.f32.mrf.mxu0
      %v2277 = vadd.f32 0.0, %v2276
      %v2278 = vpop.f32.mrf.mxu0
      %v2279 = vadd.f32 0.0, %v2278
      %2280 = vdwg.mxu0
      %v2281 = vadd.f32 %v2083, %v2262
      %v2282 = vadd.f32 %v2084, %v2264
      %v2283 = vadd.f32 %v2085, %v2267
      %v2284 = vadd.f32 %v2086, %v2269
      %v2285 = vadd.f32 %v2087, %v2272
      %v2286 = vadd.f32 %v2088, %v2274
      %v2287 = vadd.f32 %v2089, %v2277
      %v2288 = vadd.f32 %v2090, %v2279
      %v2289 = vld [vmem:[%s1424] sm:$0xe]
      %v2290 = vld [vmem:[%s1424 + $0x8] sm:$0xe]
      %v2291 = vld [vmem:[%s1424 + $0x10] sm:$0xe]
      %v2292 = vld [vmem:[%s1424 + $0x18] sm:$0xe]
      %v2293 = vld [vmem:[%s1424 + $0x20] sm:$0xe]
      %v2294 = vld [vmem:[%s1424 + $0x28] sm:$0xe]
      %v2295 = vld [vmem:[%s1424 + $0x30] sm:$0xe]
      %v2296 = vld [vmem:[%s1424 + $0x38] sm:$0xe]
      %v2313 = vrot.slane %v2289, 5
      %v2314 = vrot.slane %v2313, 4
      %v2315 = vrot.slane %v2092, 5
      %v2316 = vsel %vm1902, %v2314, %v2315
      %v2317 = vrot.slane %v2290, 5
      %v2318 = vrot.slane %v2317, 4
      %v2319 = vrot.slane %v2094, 5
      %v2320 = vsel %vm1902, %v2318, %v2319
      %v2321 = vrot.slane %v2291, 5
      %v2322 = vrot.slane %v2321, 4
      %v2323 = vrot.slane %v2096, 5
      %v2324 = vsel %vm1902, %v2322, %v2323
      %v2325 = vrot.slane %v2292, 5
      %v2326 = vrot.slane %v2325, 4
      %v2327 = vrot.slane %v2098, 5
      %v2328 = vsel %vm1902, %v2326, %v2327
      %v2329 = vrot.slane %v2293, 5
      %v2330 = vrot.slane %v2329, 4
      %v2331 = vrot.slane %v2100, 5
      %v2332 = vsel %vm1902, %v2330, %v2331
      %v2333 = vrot.slane %v2294, 5
      %v2334 = vrot.slane %v2333, 4
      %v2335 = vrot.slane %v2102, 5
      %v2336 = vsel %vm1902, %v2334, %v2335
      %v2337 = vrot.slane %v2295, 5
      %v2338 = vrot.slane %v2337, 4
      %v2339 = vrot.slane %v2104, 5
      %v2340 = vsel %vm1902, %v2338, %v2339
      %v2341 = vrot.slane %v2296, 5
      %v2342 = vrot.slane %v2341, 4
      %v2343 = vrot.slane %v2106, 5
      %v2344 = vsel %vm1902, %v2342, %v2343
      %s2345 = scalar_lea.vmem %s3, 40
      %v2346 = vld [vmem:[%s2345] sm:$0xf]
      %v2347 = vld [vmem:[%s2345 + $0x4] sm:$0xf]
      %v2348 = vunpack.c.l.b16 %v2316
      %v2349 = vunpack.c.l.b16 %v2320
      %v2350 = vunpack.c.l.b16 %v2324
      %v2351 = vunpack.c.l.b16 %v2328
      %v2352 = vunpack.c.l.b16 %v2332
      %v2353 = vunpack.c.l.b16 %v2336
      %v2354 = vunpack.c.l.b16 %v2340
      %v2355 = vunpack.c.l.b16 %v2344
      %v2356 = vpack.c.b16 %v2349, %v2348
      %v2357 = vpack.c.b16 %v2351, %v2350
      %v2358 = vpack.c.b16 %v2353, %v2352
      %v2359 = vpack.c.b16 %v2355, %v2354
      %v2362 = vunpack.c.l.b16 %v2346
      %v2363 = vunpack.c.l.b16 %v2347
      %v2364 = vpack.c.b16 %v2363, %v2362
      %v2367 = vsel %vm1767, %v2356, 0
      %v2370 = vsel %vm1767, %v2357, 0
      %v2373 = vsel %vm1767, %v2358, 0
      %v2376 = vsel %vm1767, %v2359, 0
      %2378 = vmatpush.bf16.msra.mxu0 0
      %2379 = vmatpush.bf16.msra.mxu0 0
      %2380 = vmatpush.bf16.msra.mxu0 0
      %2381 = vmatpush.bf16.msra.mxu0 0
      %2382 = vmatpush.bf16.msra.mxu0 0
      %2383 = vmatpush.bf16.msra.mxu0 0
      %2384 = vmatpush.bf16.msra.mxu0 0
      %2385 = vmatpush.bf16.msra.mxu0 %v2364
      %2386 = vmatmul.bf16.gmra.mxu0 %v2367
      %v2387 = vpop.f32.mrf.mxu0
      %v2388 = vadd.f32 0.0, %v2387
      %v2389 = vpop.f32.mrf.mxu0
      %v2390 = vadd.f32 0.0, %v2389
      %2391 = vmatmul.bf16.gmra.mxu0 %v2370
      %v2392 = vpop.f32.mrf.mxu0
      %v2393 = vadd.f32 0.0, %v2392
      %v2394 = vpop.f32.mrf.mxu0
      %v2395 = vadd.f32 0.0, %v2394
      %2396 = vmatmul.bf16.gmra.mxu0 %v2373
      %v2397 = vpop.f32.mrf.mxu0
      %v2398 = vadd.f32 0.0, %v2397
      %v2399 = vpop.f32.mrf.mxu0
      %v2400 = vadd.f32 0.0, %v2399
      %2401 = vmatmul.bf16.gmra.mxu0 %v2376
      %v2402 = vpop.f32.mrf.mxu0
      %v2403 = vadd.f32 0.0, %v2402
      %v2404 = vpop.f32.mrf.mxu0
      %v2405 = vadd.f32 0.0, %v2404
      %2406 = vdwg.mxu0
      %v2407 = vadd.f32 %v2281, %v2388
      %v2408 = vadd.f32 %v2282, %v2390
      %v2409 = vadd.f32 %v2283, %v2393
      %v2410 = vadd.f32 %v2284, %v2395
      %v2411 = vadd.f32 %v2285, %v2398
      %v2412 = vadd.f32 %v2286, %v2400
      %v2413 = vadd.f32 %v2287, %v2403
      %v2414 = vadd.f32 %v2288, %v2405
      %s2415 = scalar_lea.vmem [#allocation2], 16
      %v2416 = vld [vmem:[%s2415] sm:$0xf]
      %v2417 = vld [vmem:[%s2415 + $0x8] sm:$0xf]
      %v2418 = vld [vmem:[%s2415 + $0x10] sm:$0xf]
      %v2419 = vld [vmem:[%s2415 + $0x18] sm:$0xf]
      %v2420 = vld [vmem:[%s2415 + $0x20] sm:$0xf]
      %v2421 = vld [vmem:[%s2415 + $0x28] sm:$0xf]
      %v2422 = vld [vmem:[%s2415 + $0x30] sm:$0xf]
      %v2423 = vld [vmem:[%s2415 + $0x38] sm:$0xf]
      %s2424 = scalar_lea.vmem %s3, 48
      %v2425 = vld [vmem:[%s2424] sm:$0xf]
      %v2426 = vld [vmem:[%s2424 + $0x4] sm:$0xf]
      %v2435 = vunpack.c.l.b16 %v2416
      %v2436 = vunpack.c.l.b16 %v2417
      %v2437 = vunpack.c.l.b16 %v2418
      %v2438 = vunpack.c.l.b16 %v2419
      %v2439 = vunpack.c.l.b16 %v2420
      %v2440 = vunpack.c.l.b16 %v2421
      %v2441 = vunpack.c.l.b16 %v2422
      %v2442 = vunpack.c.l.b16 %v2423
      %v2443 = vpack.c.b16 %v2436, %v2435
      %v2444 = vpack.c.b16 %v2438, %v2437
      %v2445 = vpack.c.b16 %v2440, %v2439
      %v2446 = vpack.c.b16 %v2442, %v2441
      %v2449 = vunpack.c.l.b16 %v2425
      %v2450 = vunpack.c.l.b16 %v2426
      %v2451 = vpack.c.b16 %v2450, %v2449
      %v2454 = vsel %vm1767, %v2443, 0
      %v2457 = vsel %vm1767, %v2444, 0
      %v2460 = vsel %vm1767, %v2445, 0
      %v2463 = vsel %vm1767, %v2446, 0
      %2465 = vmatpush.bf16.msra.mxu0 0
      %2466 = vmatpush.bf16.msra.mxu0 0
      %2467 = vmatpush.bf16.msra.mxu0 0
      %2468 = vmatpush.bf16.msra.mxu0 0
      %2469 = vmatpush.bf16.msra.mxu0 0
      %2470 = vmatpush.bf16.msra.mxu0 0
      %2471 = vmatpush.bf16.msra.mxu0 0
      %2472 = vmatpush.bf16.msra.mxu0 %v2451
      %2473 = vmatmul.bf16.gmra.mxu0 %v2454
      %v2474 = vpop.f32.mrf.mxu0
      %v2475 = vadd.f32 0.0, %v2474
      %v2476 = vpop.f32.mrf.mxu0
      %v2477 = vadd.f32 0.0, %v2476
      %2478 = vmatmul.bf16.gmra.mxu0 %v2457
      %v2479 = vpop.f32.mrf.mxu0
      %v2480 = vadd.f32 0.0, %v2479
      %v2481 = vpop.f32.mrf.mxu0
      %v2482 = vadd.f32 0.0, %v2481
      %2483 = vmatmul.bf16.gmra.mxu0 %v2460
      %v2484 = vpop.f32.mrf.mxu0
      %v2485 = vadd.f32 0.0, %v2484
      %v2486 = vpop.f32.mrf.mxu0
      %v2487 = vadd.f32 0.0, %v2486
      %2488 = vmatmul.bf16.gmra.mxu0 %v2463
      %v2489 = vpop.f32.mrf.mxu0
      %v2490 = vadd.f32 0.0, %v2489
      %v2491 = vpop.f32.mrf.mxu0
      %v2492 = vadd.f32 0.0, %v2491
      %2493 = vdwg.mxu0
      %v2494 = vadd.f32 %v2407, %v2475
      %v2495 = vadd.f32 %v2408, %v2477
      %v2496 = vadd.f32 %v2409, %v2480
      %v2497 = vadd.f32 %v2410, %v2482
      %v2498 = vadd.f32 %v2411, %v2485
      %v2499 = vadd.f32 %v2412, %v2487
      %v2500 = vadd.f32 %v2413, %v2490
      %v2501 = vadd.f32 %v2414, %v2492
      %v2502 = vld [vmem:[%s2415] sm:$0xf]
      %v2503 = vld [vmem:[%s2415 + $0x4] sm:$0x1]
      %v2504 = vld [vmem:[%s2415 + $0x8] sm:$0xf]
      %v2505 = vld [vmem:[%s2415 + $0xc] sm:$0x1]
      %v2506 = vld [vmem:[%s2415 + $0x10] sm:$0xf]
      %v2507 = vld [vmem:[%s2415 + $0x14] sm:$0x1]
      %v2508 = vld [vmem:[%s2415 + $0x18] sm:$0xf]
      %v2509 = vld [vmem:[%s2415 + $0x1c] sm:$0x1]
      %v2510 = vld [vmem:[%s2415 + $0x20] sm:$0xf]
      %v2511 = vld [vmem:[%s2415 + $0x24] sm:$0x1]
      %v2512 = vld [vmem:[%s2415 + $0x28] sm:$0xf]
      %v2513 = vld [vmem:[%s2415 + $0x2c] sm:$0x1]
      %v2514 = vld [vmem:[%s2415 + $0x30] sm:$0xf]
      %v2515 = vld [vmem:[%s2415 + $0x34] sm:$0x1]
      %v2516 = vld [vmem:[%s2415 + $0x38] sm:$0xf]
      %v2517 = vld [vmem:[%s2415 + $0x3c] sm:$0x1]
      %v2519 = vshrl.u32 %v2502, 16
      %v2521 = vrot.slane %v2519, 4
      %v2522 = vshll.u32 %v2502, 16
      %v2524 = vrot.slane %v2522, 5
      %v2525 = vor.u32 %v2521, %v2524
      %v2526 = vrot.slane %v2525, 4
      %v2528 = vshll.u32 %v2503, 16
      %v2530 = vrot.slane %v2528, 5
      %v2531 = vsel %vm498, %v2526, %v2530
      %v2533 = vshrl.u32 %v2504, 16
      %v2535 = vrot.slane %v2533, 4
      %v2536 = vshll.u32 %v2504, 16
      %v2538 = vrot.slane %v2536, 5
      %v2539 = vor.u32 %v2535, %v2538
      %v2540 = vrot.slane %v2539, 4
      %v2542 = vshll.u32 %v2505, 16
      %v2544 = vrot.slane %v2542, 5
      %v2545 = vsel %vm498, %v2540, %v2544
      %v2547 = vshrl.u32 %v2506, 16
      %v2549 = vrot.slane %v2547, 4
      %v2550 = vshll.u32 %v2506, 16
      %v2552 = vrot.slane %v2550, 5
      %v2553 = vor.u32 %v2549, %v2552
      %v2554 = vrot.slane %v2553, 4
      %v2556 = vshll.u32 %v2507, 16
      %v2558 = vrot.slane %v2556, 5
      %v2559 = vsel %vm498, %v2554, %v2558
      %v2561 = vshrl.u32 %v2508, 16
      %v2563 = vrot.slane %v2561, 4
      %v2564 = vshll.u32 %v2508, 16
      %v2566 = vrot.slane %v2564, 5
      %v2567 = vor.u32 %v2563, %v2566
      %v2568 = vrot.slane %v2567, 4
      %v2570 = vshll.u32 %v2509, 16
      %v2572 = vrot.slane %v2570, 5
      %v2573 = vsel %vm498, %v2568, %v2572
      %v2575 = vshrl.u32 %v2510, 16
      %v2577 = vrot.slane %v2575, 4
      %v2578 = vshll.u32 %v2510, 16
      %v2580 = vrot.slane %v2578, 5
      %v2581 = vor.u32 %v2577, %v2580
      %v2582 = vrot.slane %v2581, 4
      %v2584 = vshll.u32 %v2511, 16
      %v2586 = vrot.slane %v2584, 5
      %v2587 = vsel %vm498, %v2582, %v2586
      %v2589 = vshrl.u32 %v2512, 16
      %v2591 = vrot.slane %v2589, 4
      %v2592 = vshll.u32 %v2512, 16
      %v2594 = vrot.slane %v2592, 5
      %v2595 = vor.u32 %v2591, %v2594
      %v2596 = vrot.slane %v2595, 4
      %v2598 = vshll.u32 %v2513, 16
      %v2600 = vrot.slane %v2598, 5
      %v2601 = vsel %vm498, %v2596, %v2600
      %v2603 = vshrl.u32 %v2514, 16
      %v2605 = vrot.slane %v2603, 4
      %v2606 = vshll.u32 %v2514, 16
      %v2608 = vrot.slane %v2606, 5
      %v2609 = vor.u32 %v2605, %v2608
      %v2610 = vrot.slane %v2609, 4
      %v2612 = vshll.u32 %v2515, 16
      %v2614 = vrot.slane %v2612, 5
      %v2615 = vsel %vm498, %v2610, %v2614
      %v2617 = vshrl.u32 %v2516, 16
      %v2619 = vrot.slane %v2617, 4
      %v2620 = vshll.u32 %v2516, 16
      %v2622 = vrot.slane %v2620, 5
      %v2623 = vor.u32 %v2619, %v2622
      %v2624 = vrot.slane %v2623, 4
      %v2626 = vshll.u32 %v2517, 16
      %v2628 = vrot.slane %v2626, 5
      %v2629 = vsel %vm498, %v2624, %v2628
      %s2630 = scalar_lea.vmem %s3, 56
      %v2631 = vld [vmem:[%s2630] sm:$0xf]
      %v2632 = vld [vmem:[%s2630 + $0x4] sm:$0xf]
      %v2633 = vunpack.c.l.b16 %v2531
      %v2634 = vunpack.c.l.b16 %v2545
      %v2635 = vunpack.c.l.b16 %v2559
      %v2636 = vunpack.c.l.b16 %v2573
      %v2637 = vunpack.c.l.b16 %v2587
      %v2638 = vunpack.c.l.b16 %v2601
      %v2639 = vunpack.c.l.b16 %v2615
      %v2640 = vunpack.c.l.b16 %v2629
      %v2641 = vpack.c.b16 %v2634, %v2633
      %v2642 = vpack.c.b16 %v2636, %v2635
      %v2643 = vpack.c.b16 %v2638, %v2637
      %v2644 = vpack.c.b16 %v2640, %v2639
      %v2647 = vunpack.c.l.b16 %v2631
      %v2648 = vunpack.c.l.b16 %v2632
      %v2649 = vpack.c.b16 %v2648, %v2647
      %v2652 = vsel %vm1767, %v2641, 0
      %v2655 = vsel %vm1767, %v2642, 0
      %v2658 = vsel %vm1767, %v2643, 0
      %v2661 = vsel %vm1767, %v2644, 0
      %2663 = vmatpush.bf16.msra.mxu0 0
      %2664 = vmatpush.bf16.msra.mxu0 0
      %2665 = vmatpush.bf16.msra.mxu0 0
      %2666 = vmatpush.bf16.msra.mxu0 0
      %2667 = vmatpush.bf16.msra.mxu0 0
      %2668 = vmatpush.bf16.msra.mxu0 0
      %2669 = vmatpush.bf16.msra.mxu0 0
      %2670 = vmatpush.bf16.msra.mxu0 %v2649
      %2671 = vmatmul.bf16.gmra.mxu0 %v2652
      %v2672 = vpop.f32.mrf.mxu0
      %v2673 = vadd.f32 0.0, %v2672
      %v2674 = vpop.f32.mrf.mxu0
      %v2675 = vadd.f32 0.0, %v2674
      %2676 = vmatmul.bf16.gmra.mxu0 %v2655
      %v2677 = vpop.f32.mrf.mxu0
      %v2678 = vadd.f32 0.0, %v2677
      %v2679 = vpop.f32.mrf.mxu0
      %v2680 = vadd.f32 0.0, %v2679
      %2681 = vmatmul.bf16.gmra.mxu0 %v2658
      %v2682 = vpop.f32.mrf.mxu0
      %v2683 = vadd.f32 0.0, %v2682
      %v2684 = vpop.f32.mrf.mxu0
      %v2685 = vadd.f32 0.0, %v2684
      %2686 = vmatmul.bf16.gmra.mxu0 %v2661
      %v2687 = vpop.f32.mrf.mxu0
      %v2688 = vadd.f32 0.0, %v2687
      %v2689 = vpop.f32.mrf.mxu0
      %v2690 = vadd.f32 0.0, %v2689
      %2691 = vdwg.mxu0
      %v2692 = vadd.f32 %v2494, %v2673
      %v2693 = vadd.f32 %v2495, %v2675
      %v2694 = vadd.f32 %v2496, %v2678
      %v2695 = vadd.f32 %v2497, %v2680
      %v2696 = vadd.f32 %v2498, %v2683
      %v2697 = vadd.f32 %v2499, %v2685
      %v2698 = vadd.f32 %v2500, %v2688
      %v2699 = vadd.f32 %v2501, %v2690
      %v2700 = vld [vmem:[%s2415] sm:$0xe]
      %v2701 = vld [vmem:[%s2415 + $0x8] sm:$0xe]
      %v2702 = vld [vmem:[%s2415 + $0x10] sm:$0xe]
      %v2703 = vld [vmem:[%s2415 + $0x18] sm:$0xe]
      %v2704 = vld [vmem:[%s2415 + $0x20] sm:$0xe]
      %v2705 = vld [vmem:[%s2415 + $0x28] sm:$0xe]
      %v2706 = vld [vmem:[%s2415 + $0x30] sm:$0xe]
      %v2707 = vld [vmem:[%s2415 + $0x38] sm:$0xe]
      %v2724 = vrot.slane %v2700, 5
      %v2725 = vrot.slane %v2724, 4
      %v2726 = vrot.slane %v2503, 5
      %v2727 = vsel %vm1902, %v2725, %v2726
      %v2728 = vrot.slane %v2701, 5
      %v2729 = vrot.slane %v2728, 4
      %v2730 = vrot.slane %v2505, 5
      %v2731 = vsel %vm1902, %v2729, %v2730
      %v2732 = vrot.slane %v2702, 5
      %v2733 = vrot.slane %v2732, 4
      %v2734 = vrot.slane %v2507, 5
      %v2735 = vsel %vm1902, %v2733, %v2734
      %v2736 = vrot.slane %v2703, 5
      %v2737 = vrot.slane %v2736, 4
      %v2738 = vrot.slane %v2509, 5
      %v2739 = vsel %vm1902, %v2737, %v2738
      %v2740 = vrot.slane %v2704, 5
      %v2741 = vrot.slane %v2740, 4
      %v2742 = vrot.slane %v2511, 5
      %v2743 = vsel %vm1902, %v2741, %v2742
      %v2744 = vrot.slane %v2705, 5
      %v2745 = vrot.slane %v2744, 4
      %v2746 = vrot.slane %v2513, 5
      %v2747 = vsel %vm1902, %v2745, %v2746
      %v2748 = vrot.slane %v2706, 5
      %v2749 = vrot.slane %v2748, 4
      %v2750 = vrot.slane %v2515, 5
      %v2751 = vsel %vm1902, %v2749, %v2750
      %v2752 = vrot.slane %v2707, 5
      %v2753 = vrot.slane %v2752, 4
      %v2754 = vrot.slane %v2517, 5
      %v2755 = vsel %vm1902, %v2753, %v2754
      %s2756 = scalar_lea.vmem %s3, 64
      %v2757 = vld [vmem:[%s2756] sm:$0xf]
      %v2758 = vld [vmem:[%s2756 + $0x4] sm:$0xf]
      %v2759 = vunpack.c.l.b16 %v2727
      %v2760 = vunpack.c.l.b16 %v2731
      %v2761 = vunpack.c.l.b16 %v2735
      %v2762 = vunpack.c.l.b16 %v2739
      %v2763 = vunpack.c.l.b16 %v2743
      %v2764 = vunpack.c.l.b16 %v2747
      %v2765 = vunpack.c.l.b16 %v2751
      %v2766 = vunpack.c.l.b16 %v2755
      %v2767 = vpack.c.b16 %v2760, %v2759
      %v2768 = vpack.c.b16 %v2762, %v2761
      %v2769 = vpack.c.b16 %v2764, %v2763
      %v2770 = vpack.c.b16 %v2766, %v2765
      %v2773 = vunpack.c.l.b16 %v2757
      %v2774 = vunpack.c.l.b16 %v2758
      %v2775 = vpack.c.b16 %v2774, %v2773
      %v2778 = vsel %vm1767, %v2767, 0
      %v2781 = vsel %vm1767, %v2768, 0
      %v2784 = vsel %vm1767, %v2769, 0
      %v2787 = vsel %vm1767, %v2770, 0
      %2789 = vmatpush.bf16.msra.mxu0 0
      %2790 = vmatpush.bf16.msra.mxu0 0
      %2791 = vmatpush.bf16.msra.mxu0 0
      %2792 = vmatpush.bf16.msra.mxu0 0
      %2793 = vmatpush.bf16.msra.mxu0 0
      %2794 = vmatpush.bf16.msra.mxu0 0
      %2795 = vmatpush.bf16.msra.mxu0 0
      %2796 = vmatpush.bf16.msra.mxu0 %v2775
      %2797 = vmatmul.bf16.gmra.mxu0 %v2778
      %v2798 = vpop.f32.mrf.mxu0
      %v2799 = vadd.f32 0.0, %v2798
      %v2800 = vpop.f32.mrf.mxu0
      %v2801 = vadd.f32 0.0, %v2800
      %2802 = vmatmul.bf16.gmra.mxu0 %v2781
      %v2803 = vpop.f32.mrf.mxu0
      %v2804 = vadd.f32 0.0, %v2803
      %v2805 = vpop.f32.mrf.mxu0
      %v2806 = vadd.f32 0.0, %v2805
      %2807 = vmatmul.bf16.gmra.mxu0 %v2784
      %v2808 = vpop.f32.mrf.mxu0
      %v2809 = vadd.f32 0.0, %v2808
      %v2810 = vpop.f32.mrf.mxu0
      %v2811 = vadd.f32 0.0, %v2810
      %2812 = vmatmul.bf16.gmra.mxu0 %v2787
      %v2813 = vpop.f32.mrf.mxu0
      %v2814 = vadd.f32 0.0, %v2813
      %v2815 = vpop.f32.mrf.mxu0
      %v2816 = vadd.f32 0.0, %v2815
      %2817 = vdwg.mxu0
      %v2818 = vadd.f32 %v2692, %v2799
      %v2819 = vadd.f32 %v2693, %v2801
      %v2820 = vadd.f32 %v2694, %v2804
      %v2821 = vadd.f32 %v2695, %v2806
      %v2822 = vadd.f32 %v2696, %v2809
      %v2823 = vadd.f32 %v2697, %v2811
      %v2824 = vadd.f32 %v2698, %v2814
      %v2825 = vadd.f32 %v2699, %v2816
      %v2826 = vld [vmem:[%s4] sm:$0x1]
      %v2828 = vperm.slane %v2826, 0
      %v2830 = vadd.f32 %v2818, %v2828
      %v2831 = vadd.f32 %v2819, %v2828
      %v2832 = vadd.f32 %v2820, %v2828
      %v2833 = vadd.f32 %v2821, %v2828
      %v2834 = vadd.f32 %v2822, %v2828
      %v2835 = vadd.f32 %v2823, %v2828
      %v2836 = vadd.f32 %v2824, %v2828
      %v2837 = vadd.f32 %v2825, %v2828
      %v2838 = vmax.f32 %v2830, 0.0
      %v2839 = vmax.f32 %v2831, 0.0
      %v2840 = vmax.f32 %v2832, 0.0
      %v2841 = vmax.f32 %v2833, 0.0
      %v2842 = vmax.f32 %v2834, 0.0
      %v2843 = vmax.f32 %v2835, 0.0
      %v2844 = vmax.f32 %v2836, 0.0
      %v2845 = vmax.f32 %v2837, 0.0
      %v2846 = vsel %vm1767, %v2838, 0.0
      %v2847 = vsel %vm1767, %v2839, 0.0
      %v2848 = vadd.f32 %v2846, %v2847
      %v2849 = vsel %vm1767, %v2840, 0.0
      %v2850 = vadd.f32 %v2848, %v2849
      %v2851 = vsel %vm1767, %v2841, 0.0
      %v2852 = vadd.f32 %v2850, %v2851
      %v2853 = vsel %vm1767, %v2842, 0.0
      %v2854 = vadd.f32 %v2852, %v2853
      %v2855 = vsel %vm1767, %v2843, 0.0
      %v2856 = vadd.f32 %v2854, %v2855
      %v2857 = vsel %vm1767, %v2844, 0.0
      %v2858 = vadd.f32 %v2856, %v2857
      %v2859 = vsel %vm1767, %v2845, 0.0
      %v2860 = vadd.f32 %v2858, %v2859
      %v2861 = vrot.slane %v2860, 4
      %v2862 = vadd.f32 %v2860, %v2861
      %v2863 = vrot.slane %v2862, 2
      %v2864 = vadd.f32 %v2862, %v2863
      %v2865 = vrot.slane %v2864, 1
      %v2866 = vadd.f32 %v2864, %v2865
      %v2867 = vrcp.pop 64.0
      %v2868 = vmul.f32 64.0, %v2867
      %v2869 = vsub.f32 1.0, %v2868
      %v2870 = vmul.f32 %v2867, %v2869
      %v2871 = vadd.f32 %v2867, %v2870
      %vm2872 = vweird.f32 %v2867
      %v2873 = vsel %vm2872, %v2867, %v2871
      %v2874 = vmul.f32 %v2866, %v2873
      %v2875 = vld [vmem:[%s5] sm:$0xff]
      %v2876 = vld [vmem:[%s5 + $0x8] sm:$0xff]
      %v2877 = vld [vmem:[%s6] sm:$0x1]
      %v2879 = vsel %vm1767, %v2874, 0
      %2881 = vmatpush.msra.mxu0 0.0
      %2882 = vmatpush.msra.mxu0 0.0
      %2883 = vmatpush.msra.mxu0 0.0
      %2884 = vmatpush.msra.mxu0 0.0
      %2885 = vmatpush.msra.mxu0 0.0
      %2886 = vmatpush.msra.mxu0 0.0
      %2887 = vmatpush.msra.mxu0 0.0
      %2888 = vmatpush.msra.mxu0 0.0
      %2889 = vmatpush.msra.mxu0 0.0
      %2890 = vmatpush.msra.mxu0 0.0
      %2891 = vmatpush.msra.mxu0 0.0
      %2892 = vmatpush.msra.mxu0 0.0
      %2893 = vmatpush.msra.mxu0 0.0
      %2894 = vmatpush.msra.mxu0 0.0
      %2895 = vmatpush.msra.mxu0 %v2876
      %2896 = vmatpush.msra.mxu0 %v2875
      %2897 = vmatmul.f32.gmra.mxu0 %v2879
      %v2898 = vpop.f32.mrf.mxu0
      %v2899 = vadd.f32 %v2877, %v2898
      %2900 = vdwg.mxu0
      %v2901 = vmul.f32 %v2899, 0.5
      %v2902 = vmul.f32 %v2899, 0.044715
      %v2903 = vmul.f32 %v2902, %v2899
      %v2904 = vmul.f32 %v2903, %v2899
      %v2905 = vadd.f32 %v2899, %v2904
      %v2906 = vmul.f32 %v2905, 0.7978846
      %v2907 = vtanh.pop %v2906
      %v2908 = vadd.f32 %v2907, 1.0
      %v2909 = vmul.f32 %v2901, %v2908
      %v2910 = vld [vmem:[%s7] sm:$0xff]
      %v2911 = vld [vmem:[%s7 + $0x8] sm:$0xff]
      %v2912 = vld [vmem:[%s7 + $0x10] sm:$0xff]
      %v2913 = vld [vmem:[%s7 + $0x18] sm:$0xff]
      %v2914 = vld [vmem:[%s8] sm:$0x1]
      %vm2915 = vcmask 261120
      %v2917 = vsel %vm2915, %v2909, 0
      %2919 = vmatpush.msra.mxu0 0.0
      %2920 = vmatpush.msra.mxu0 0.0
      %2921 = vmatpush.msra.mxu0 0.0
      %2922 = vmatpush.msra.mxu0 0.0
      %2923 = vmatpush.msra.mxu0 0.0
      %2924 = vmatpush.msra.mxu0 0.0
      %2925 = vmatpush.msra.mxu0 0.0
      %2926 = vmatpush.msra.mxu0 0.0
      %2927 = vmatpush.msra.mxu0 0.0
      %2928 = vmatpush.msra.mxu0 0.0
      %2929 = vmatpush.msra.mxu0 0.0
      %2930 = vmatpush.msra.mxu0 0.0
      %2931 = vmatpush.msra.mxu0 %v2913
      %2932 = vmatpush.msra.mxu0 %v2912
      %2933 = vmatpush.msra.mxu0 %v2911
      %2934 = vmatpush.msra.mxu0 %v2910
      %2935 = vmatmul.f32.gmra.mxu0 %v2917
      %v2936 = vpop.f32.mrf.mxu0
      %v2937 = vadd.f32 %v2914, %v2936
      %2938 = vdwg.mxu0
      %v2939 = vtanh.pop %v2937
      %v2940 = vmul.f32 %v2939, 0.9
      %v2941 = vadd.f32 %v2940, 1.0
      %2942 = vst [vmem:[%s328] sm:$0x1] %v2941
      %p2943 = scmp.lt.s32.totalorder %s20, 1
      %s2944 = scalar_select %p2943, %s20, 1
      %s2945 = scalar_lea.vmem %s9, %s2944
      // Predicated region
      $region57: #{hw_scale_ratio.1} parent=55 // pred_check
        %p2946 = pneg %p232
      $region58: #{hw_scale_ratio.1} parent=55 // pred_check_branch
        %2948 = sbr.rel (%p2946) target = $region60
      $region59: #{hw_scale_ratio.1} parent=55 // pred_region
        _
      $region60: #{hw_scale_ratio.1} parent=55 // pred_fallthru
        _
    $region56: #{hw_scale_ratio.1} parent=5 // pred_fallthru
      _
    %p2949 = scmp.le.s32.totalorder 2, %s15
    // Predicated region
    $region61: #{hw_scale_ratio.1} parent=5 // pred_check
      %p2950 = pneg %p2949
    $region62: #{hw_scale_ratio.1} parent=5 // pred_check_branch
      %2952 = sbr.rel (%p2950) target = $region64
    $region63: #{hw_scale_ratio.1} parent=5 // pred_region
      %s2953 = ssub.s32 %s15, 2
      // Predicated region
      $region65: #{hw_scale_ratio.1} parent=63 // pred_check
        %p2954 = pneg %p238
      $region66: #{hw_scale_ratio.1} parent=63 // pred_check_branch
        %2956 = sbr.rel (%p2954) target = $region68
      $region67: #{hw_scale_ratio.1} parent=63 // pred_region
        %p2957 = scmp.lt.s32.totalorder %s21, 1
        %s2958 = scalar_select %p2957, %s21, 1
        %s2959 = scalar_lea.vmem %s9, %s2958
      $region68: #{hw_scale_ratio.1} parent=63 // pred_fallthru
        _
    $region64: #{hw_scale_ratio.1} parent=5 // pred_fallthru
      _
  $region6: #{hw_scale_ratio.1} parent=0 // loop_footer
    %s19 = sadd.s32 1, %s15
  $region7: #{hw_scale_ratio.1} parent=0 // loop_footer_branch
    %14 = sbr.rel target = $region3
  $region8: #{hw_scale_ratio.1} parent=0 // loop_exit
    _

</llo_original>
